<compile_context>
chip_gen: v5e
topology: v5e:2x2
jax: 0.10.0
libtpu: 0.0.40
codegen_flags: <defaults>
</compile_context>

<pallas_src>
import functools
import math

import jax
import jax.numpy as jnp
from jax.experimental import pallas as pl
from jax.experimental.pallas import tpu as pltpu


def encoder_stack_kernel(x_ref, bias_ref, wqkv_ref, wfc_ref, vec_ref,
                         w1_ref, bb1_ref, w2_ref,
                         o_ref, act_ref, *, heads):
    """One grid step = one batch tile x one transformer layer.

    Grid = (N // B_tile, n_layers); the layer axis is 'arbitrary' and the
    residual stream for the whole batch tile is carried across it in `act_ref`
    (VMEM scratch, shape (B_tile * L, E), f32).
    """
    layer = pl.program_id(1)
    n_layers = pl.num_programs(1)

    B, L, E = x_ref.shape
    D = E // heads
    BL = B * L

    # Layer 0: load this batch tile's embedding slab into the resident scratch.
    @pl.when(layer == 0)
    def _():
        act_ref[...] = x_ref[...].reshape(BL, E)

    x = act_ref[...]                       # (BL, E) f32 residual stream
    xb = x.astype(jnp.bfloat16)
    bias = bias_ref[...]                   # (B, 1, L) additive mask bias (pre-scaled)

    wq = wqkv_ref[0, 0]                    # (D, D) bf16, 1/sqrt(E) folded in
    wk = wqkv_ref[0, 1]
    wv = wqkv_ref[0, 2]

    # --- SelfAttention: per-head projection + attention core + fused fc_out ---
    att = None
    for h in range(heads):
        lo = h * D
        xh = xb[:, lo:lo + D]                                            # (BL, D)
        qh = jnp.dot(xh, wq, preferred_element_type=jnp.float32).astype(jnp.bfloat16)
        kh = jnp.dot(xh, wk, preferred_element_type=jnp.float32).astype(jnp.bfloat16)
        vh = jnp.dot(xh, wv, preferred_element_type=jnp.float32).astype(jnp.bfloat16)
        q3 = qh.reshape(B, L, D)
        k3 = kh.reshape(B, L, D)
        v3 = vh.reshape(B, L, D)
        # energy = q @ k^T (contraction on the last dim of both -> no transpose op).
        e = jnp.einsum('bqd,bkd->bqk', q3, k3,
                       preferred_element_type=jnp.float32)               # (B, L, L)
        e = e + bias                                                     # mask keys
        m = jnp.max(e, axis=-1, keepdims=True)
        p = jnp.exp(e - m)
        denom = jnp.sum(p, axis=-1, keepdims=True)
        # approx reciprocal (EUP): ~1e-3 relative error vs exact softmax (inference-OK).
        attn = p * pl.reciprocal(denom, approx=True)
        oh = jnp.einsum('bqk,bkd->bqd', attn.astype(jnp.bfloat16), v3,
                        preferred_element_type=jnp.float32)              # (B, L, D)
        # Fold this head straight into fc_out: lane-dense (BL, E) output tiles.
        contrib = jnp.dot(oh.reshape(BL, D).astype(jnp.bfloat16), wfc_ref[0, h],
                          preferred_element_type=jnp.float32)            # (BL, E)
        att = contrib if att is None else att + contrib

    vec = vec_ref[0]                       # (8, E) packed per-layer f32 vectors
    bfc, g1, b1 = vec[0:1], vec[1:2], vec[2:3]
    bb2, g2, b2 = vec[3:4], vec[4:5], vec[5:6]

    att_out = att + bfc

    # --- residual + LayerNorm 1 (dropout = identity at inference) ------------
    y = att_out + x
    mu = jnp.mean(y, axis=-1, keepdims=True)
    var = jnp.mean((y - mu) ** 2, axis=-1, keepdims=True)
    x1 = (y - mu) * jax.lax.rsqrt(var + 1e-5) * g1 + b1

    # --- feed-forward: Linear -> ReLU -> Linear -------------------------------
    h1 = jnp.dot(x1.astype(jnp.bfloat16), w1_ref[0],
                 preferred_element_type=jnp.float32) + bb1_ref[0]
    h1 = jnp.maximum(h1, 0.0)
    ff = jnp.dot(h1.astype(jnp.bfloat16), w2_ref[0],
                 preferred_element_type=jnp.float32) + bb2

    # --- residual + LayerNorm 2 ------------------------------------------------
    z = ff + x1
    mu2 = jnp.mean(z, axis=-1, keepdims=True)
    var2 = jnp.mean((z - mu2) ** 2, axis=-1, keepdims=True)
    out = (z - mu2) * jax.lax.rsqrt(var2 + 1e-5) * g2 + b2

    # Carry the residual stream to the next layer; emit output on the last one.
    act_ref[...] = out

    @pl.when(layer == n_layers - 1)
    def _():
        o_ref[...] = out.reshape(B, L, E).astype(o_ref.dtype)


def _pick_batch_tile(N, L, E, F):
    """Largest divisor of N whose per-tile live-activation set fits a
    conservative VMEM budget (so it also fits v7x's 64 MiB), preferring >= 2
    blocks on the parallel batch axis so the grid still splits across two TCs."""
    per_row_bytes = 4 * L * (6 * E + 2 * F + 3 * L)   # rough live f32 activations / row
    budget = 8 * 1024 * 1024
    cap = max(1, budget // max(per_row_bytes, 1))
    divisors = [d for d in range(1, N + 1) if N % d == 0 and d <= cap]
    if not divisors:
        return 1
    multi = [d for d in divisors if N // d >= 2]
    return max(multi) if multi else max(divisors)


def _vmem_limit_bytes():
    """Per-generation scoped-VMEM limit: v5e/v6e have 128 MiB physical, v7x 64 MiB."""
    kind = ""
    try:
        kind = jax.devices()[0].device_kind.lower()
    except Exception:
        pass
    if kind and "7" not in kind:
        return 96 * 1024 * 1024       # v4 / v5e / v6e
    return 48 * 1024 * 1024           # v7x (or unknown): leave headroom under 64 MiB


def encoder_forward(tokens, mask, word_emb, pos_emb, params,
                    *, heads, embed_size, n_layers, batch_tile=None):
    """tokens: (N, L) int32; mask: (N, 1, L) {0,1} key-padding mask."""
    N, L = tokens.shape
    E = embed_size
    D = E // heads
    F = params["w1T"].shape[-1]

    # Embedding gathers are glue (plain JAX).  Dropout = identity (inference).
    positions = jnp.arange(L, dtype=jnp.int32)
    x = (word_emb[tokens] + pos_emb[positions][None, :, :]).astype(jnp.float32)

    # Additive mask bias with the 1/sqrt(E) scale folded in:
    #   masked key -> -1e20/sqrt(E), matching masked_fill(-1e20) then /sqrt(E).
    bias = (mask.astype(jnp.float32) - 1.0) * jnp.float32(1e20 / math.sqrt(E))

    B = batch_tile if batch_tile is not None else _pick_batch_tile(N, L, E, F)
    assert N % B == 0, f"batch tile {B} must divide batch size {N}"

    kernel = functools.partial(encoder_stack_kernel, heads=heads)

    in_specs = [
        pl.BlockSpec((B, L, E), lambda n, l: (n, 0, 0)),            # embedded tokens
        pl.BlockSpec((B, 1, L), lambda n, l: (n, 0, 0)),            # additive mask bias
        pl.BlockSpec((1, 3, D, D), lambda n, l: (l, 0, 0, 0)),      # q/k/v weights
        pl.BlockSpec((1, heads, D, E), lambda n, l: (l, 0, 0, 0)),  # fc_out, per head
        pl.BlockSpec((1, 8, E), lambda n, l: (l, 0, 0)),            # packed vectors
        pl.BlockSpec((1, E, F), lambda n, l: (l, 0, 0)),            # ffn w1
        pl.BlockSpec((1, 1, F), lambda n, l: (l, 0, 0)),            # ffn b1
        pl.BlockSpec((1, F, E), lambda n, l: (l, 0, 0)),            # ffn w2
    ]

    return pl.pallas_call(
        kernel,
        out_shape=jax.ShapeDtypeStruct((N, L, E), jnp.float32),
        grid=(N // B, n_layers),
        in_specs=in_specs,
        out_specs=pl.BlockSpec((B, L, E), lambda n, l: (n, 0, 0)),
        scratch_shapes=[pltpu.VMEM((B * L, E), jnp.float32)],       # residual carry
        compiler_params=pltpu.CompilerParams(
            dimension_semantics=("parallel", "arbitrary"),
            vmem_limit_bytes=_vmem_limit_bytes()),
    )(x, bias, params["wqkvT"], params["wfcT"], params["vecE"],
      params["w1T"], params["bb1"], params["w2T"])


def init_layer_params(key, embed_size, heads, forward_expansion):
    """Raw per-layer parameters, matching the PyTorch module's tensors."""
    head_dim = embed_size // heads
    fwd = forward_expansion * embed_size
    ks = jax.random.split(key, 8)
    s = 0.1
    return {
        "wq": s * jax.random.normal(ks[0], (head_dim, head_dim), jnp.float32),
        "wk": s * jax.random.normal(ks[1], (head_dim, head_dim), jnp.float32),
        "wv": s * jax.random.normal(ks[2], (head_dim, head_dim), jnp.float32),
        "wfc": s * jax.random.normal(ks[3], (embed_size, embed_size), jnp.float32),
        "bfc": s * jax.random.normal(ks[4], (1, embed_size), jnp.float32),
        "g1": jnp.ones((1, embed_size), jnp.float32),
        "b1": jnp.zeros((1, embed_size), jnp.float32),
        "w1": s * jax.random.normal(ks[5], (fwd, embed_size), jnp.float32),
        "bb1": s * jax.random.normal(ks[6], (1, fwd), jnp.float32),
        "w2": s * jax.random.normal(ks[7], (embed_size, fwd), jnp.float32),
        "bb2": jnp.zeros((1, embed_size), jnp.float32),
        "g2": jnp.ones((1, embed_size), jnp.float32),
        "b2": jnp.zeros((1, embed_size), jnp.float32),
    }


def prepare_encoder_params(layer_params, embed_size, heads):
    """Kernel-layout parameters: stacked over layers, transposed for x @ W^T,
    q/k/v packed into one array, fc_out split per head, small vectors packed,
    bf16 matmul weights, f32 biases / LayerNorm params."""
    E = embed_size
    D = E // heads
    scale = jnp.float32(1.0 / math.sqrt(E))

    wqkvT, wfcT, vecE, w1T, bb1, w2T = [], [], [], [], [], []
    for p in layer_params:
        # nn.Linear computes x @ W.T; 1/sqrt(E) attention scale folded into Wq (free).
        wqkvT.append(jnp.stack([p["wq"].T * scale, p["wk"].T, p["wv"].T]
                               ).astype(jnp.bfloat16))                 # (3, D, D)
        wfcT.append(p["wfc"].T.reshape(heads, D, E).astype(jnp.bfloat16))
        vecE.append(jnp.concatenate(
            [p["bfc"], p["g1"], p["b1"], p["bb2"], p["g2"], p["b2"],
             jnp.zeros((2, E), jnp.float32)], axis=0).astype(jnp.float32))  # (8, E)
        w1T.append(p["w1"].T.astype(jnp.bfloat16))                     # (E, F)
        bb1.append(p["bb1"].astype(jnp.float32))                       # (1, F)
        w2T.append(p["w2"].T.astype(jnp.bfloat16))                     # (F, E)

    return {
        "wqkvT": jnp.stack(wqkvT),   # (n_layers, 3, D, D) bf16
        "wfcT": jnp.stack(wfcT),     # (n_layers, heads, D, E) bf16
        "vecE": jnp.stack(vecE),     # (n_layers, 8, E) f32
        "w1T": jnp.stack(w1T),       # (n_layers, E, F) bf16
        "bb1": jnp.stack(bb1),       # (n_layers, 1, F) f32
        "w2T": jnp.stack(w2T),       # (n_layers, F, E) bf16
    }


def _layer_norm_ref(x, g, b, eps=1e-5):
    mu = jnp.mean(x, axis=-1, keepdims=True)
    var = jnp.mean((x - mu) ** 2, axis=-1, keepdims=True)
    return (x - mu) * jax.lax.rsqrt(var + eps) * g + b


def encoder_reference(tokens, mask, word_emb, pos_emb, raw_layers, *, heads, embed_size):
    """Pure-JAX f32 replica of the PyTorch forward (inference: dropout = identity)."""
    N, L = tokens.shape
    E = embed_size
    D = E // heads
    positions = jnp.arange(L, dtype=jnp.int32)
    out = word_emb[tokens] + pos_emb[positions][None, :, :]
    for p in raw_layers:
        x = out
        xh = x.reshape(N, L, heads, D)
        v = xh @ p["wv"].T
        k = xh @ p["wk"].T
        q = xh @ p["wq"].T
        energy = jnp.einsum('nqhd,nkhd->nhqk', q, k)
        energy = jnp.where(mask[:, :, None, :] == 0, jnp.float32(-1e20), energy)
        attn = jax.nn.softmax(energy / math.sqrt(E), axis=3)
        att = jnp.einsum('nhql,nlhd->nqhd', attn, v).reshape(N, L, E)
        att = att @ p["wfc"].T + p["bfc"]
        x1 = _layer_norm_ref(att + x, p["g1"], p["b1"])
        hdn = jnp.maximum(x1 @ p["w1"].T + p["bb1"], 0.0)
        ff = hdn @ p["w2"].T + p["bb2"]
        out = _layer_norm_ref(ff + x1, p["g2"], p["b2"])
    return out


if __name__ == "__main__":
    # Small, deterministic configuration.
    src_vocab_size = 50
    embed_size = 32
    n_layers = 2
    heads = 4
    forward_expansion = 4
    max_length = 16
    N, seq = 2, 8

    key = jax.random.PRNGKey(0)
    k_tok, k_we, k_pe, k_layers = jax.random.split(key, 4)

    tokens = jax.random.randint(k_tok, (N, seq), 0, src_vocab_size, jnp.int32)
    word_emb = jax.random.normal(k_we, (src_vocab_size, embed_size), jnp.float32)
    pos_emb = jax.random.normal(k_pe, (max_length, embed_size), jnp.float32)

    layer_keys = jax.random.split(k_layers, n_layers)
    raw_layers = [init_layer_params(k, embed_size, heads, forward_expansion)
                  for k in layer_keys]
    params = prepare_encoder_params(raw_layers, embed_size, heads)

    # Padding-style mask (N, 1, L): mask out the last two keys of batch row 1.
    mask = jnp.ones((N, 1, seq), jnp.float32)
    mask = mask.at[1, 0, -2:].set(0.0)

    # TODO(synk): at very large E/F, add K-tiling of the FFN matmuls inside the
    # kernel so a single layer's weights need not be VMEM-resident all at once.
    out = encoder_forward(tokens, mask, word_emb, pos_emb, params,
                          heads=heads, embed_size=embed_size, n_layers=n_layers)
    out = jax.block_until_ready(out)

    ref = encoder_reference(tokens, mask, word_emb, pos_emb, raw_layers,
                            heads=heads, embed_size=embed_size)
    assert out.shape == (N, seq, embed_size)
    assert bool(jnp.all(jnp.isfinite(out)))
    max_err = float(jnp.max(jnp.abs(out - ref)))
    # bf16 matmul operands + approx reciprocal vs the pure-f32 reference.
    assert max_err < 0.15, f"max abs error vs reference: {max_err}"
    print("KERNEL_OK")
</pallas_src>

<mosaic_0001>
module attributes {stable_mosaic.version = 11 : i64} {
  func.func @encoder_stack_kernel(%arg0: i32, %arg1: i32, %arg2: memref<1x8x32xf32, #tpu.memory_space<vmem>>, %arg3: memref<1x1x8xf32, #tpu.memory_space<vmem>>, %arg4: memref<1x3x8x8xbf16, #tpu.memory_space<vmem>>, %arg5: memref<1x4x8x32xbf16, #tpu.memory_space<vmem>>, %arg6: memref<1x8x32xf32, #tpu.memory_space<vmem>>, %arg7: memref<1x32x128xbf16, #tpu.memory_space<vmem>>, %arg8: memref<1x1x128xf32, #tpu.memory_space<vmem>>, %arg9: memref<1x128x32xbf16, #tpu.memory_space<vmem>>, %arg10: memref<1x8x32xf32, #tpu.memory_space<vmem>>, %arg11: memref<8x32xf32, #tpu.memory_space<vmem>>) attributes {dimension_semantics = [#tpu.dimension_semantics<parallel>, #tpu.dimension_semantics<arbitrary>], iteration_bounds = array<i64: 2, 2>, scalar_prefetch = 0 : i64, scratch_operands = 1 : i64, tpu.core_type = #tpu.core_type<tc>, window_params = [{transform_indices = @transform_0, window_bounds = array<i64: 1, 8, 32>}, {transform_indices = @transform_1, window_bounds = array<i64: 1, 1, 8>}, {transform_indices = @transform_2, window_bounds = array<i64: 1, 3, 8, 8>}, {transform_indices = @transform_3, window_bounds = array<i64: 1, 4, 8, 32>}, {transform_indices = @transform_4, window_bounds = array<i64: 1, 8, 32>}, {transform_indices = @transform_5, window_bounds = array<i64: 1, 32, 128>}, {transform_indices = @transform_6, window_bounds = array<i64: 1, 1, 128>}, {transform_indices = @transform_7, window_bounds = array<i64: 1, 128, 32>}, {transform_indices = @transform_8, window_bounds = array<i64: 1, 8, 32>}]} {
    %c0_i32 = arith.constant 0 : i32
    %0 = arith.cmpi eq, %arg1, %c0_i32 : i32
    %1 = arith.extui %0 : i1 to i32
    %c0_i32_0 = arith.constant 0 : i32
    %2 = arith.cmpi ne, %1, %c0_i32_0 : i32
    scf.if %2 {
      %c0_89 = arith.constant 0 : index
      %c0_90 = arith.constant 0 : index
      %c0_91 = arith.constant 0 : index
      %211 = vector.load %arg2[%c0_89, %c0_90, %c0_91] : memref<1x8x32xf32, #tpu.memory_space<vmem>>, vector<1x8x32xf32>
      %212 = vector.shape_cast %211 : vector<1x8x32xf32> to vector<8x32xf32>
      %c0_92 = arith.constant 0 : index
      %c0_93 = arith.constant 0 : index
      %213 = vector.load %arg11[%c0_92, %c0_93] : memref<8x32xf32, #tpu.memory_space<vmem>>, vector<8x32xf32>
      tpu.vector_store %arg11[%c0_92, %c0_93], %212 {strides = array<i32>} : memref<8x32xf32, #tpu.memory_space<vmem>>, vector<8x32xf32>,
    } else {
    }
    %c0 = arith.constant 0 : index
    %c0_1 = arith.constant 0 : index
    %3 = vector.load %arg11[%c0, %c0_1] : memref<8x32xf32, #tpu.memory_space<vmem>>, vector<8x32xf32>
    %4 = arith.truncf %3 : vector<8x32xf32> to vector<8x32xbf16>
    %c0_2 = arith.constant 0 : index
    %c0_3 = arith.constant 0 : index
    %c0_4 = arith.constant 0 : index
    %5 = vector.load %arg3[%c0_2, %c0_3, %c0_4] : memref<1x1x8xf32, #tpu.memory_space<vmem>>, vector<1x1x8xf32>
    %c0_5 = arith.constant 0 : index
    %c0_6 = arith.constant 0 : index
    %c0_7 = arith.constant 0 : index
    %c0_8 = arith.constant 0 : index
    %6 = vector.load %arg4[%c0_5, %c0_6, %c0_7, %c0_8] : memref<1x3x8x8xbf16, #tpu.memory_space<vmem>>, vector<1x1x8x8xbf16>
    %7 = vector.shape_cast %6 : vector<1x1x8x8xbf16> to vector<8x8xbf16>
    %c0_9 = arith.constant 0 : index
    %c1 = arith.constant 1 : index
    %c0_10 = arith.constant 0 : index
    %c0_11 = arith.constant 0 : index
    %8 = vector.load %arg4[%c0_9, %c1, %c0_10, %c0_11] : memref<1x3x8x8xbf16, #tpu.memory_space<vmem>>, vector<1x1x8x8xbf16>
    %9 = vector.shape_cast %8 : vector<1x1x8x8xbf16> to vector<8x8xbf16>
    %c0_12 = arith.constant 0 : index
    %c2 = arith.constant 2 : index
    %c0_13 = arith.constant 0 : index
    %c0_14 = arith.constant 0 : index
    %10 = vector.load %arg4[%c0_12, %c2, %c0_13, %c0_14] : memref<1x3x8x8xbf16, #tpu.memory_space<vmem>>, vector<1x1x8x8xbf16>
    %11 = vector.shape_cast %10 : vector<1x1x8x8xbf16> to vector<8x8xbf16>
    %12 = vector.extract_strided_slice %4 {offsets = [0, 0], sizes = [8, 8], strides = [1, 1]} : vector<8x32xbf16> to vector<8x8xbf16>
    %cst = arith.constant dense<0.000000e+00> : vector<8x8xf32>
    %13 = tpu.matmul %12, %7, %cst {dimension_numbers = #tpu.dot_dimension_numbers<[1], [0], [0], [1], [0, 0, 1, 1], [], []>} : vector<8x8xbf16>, vector<8x8xbf16>, vector<8x8xf32> -> vector<8x8xf32>
    %14 = arith.truncf %13 : vector<8x8xf32> to vector<8x8xbf16>
    %cst_15 = arith.constant dense<0.000000e+00> : vector<8x8xf32>
    %15 = tpu.matmul %12, %9, %cst_15 {dimension_numbers = #tpu.dot_dimension_numbers<[1], [0], [0], [1], [0, 0, 1, 1], [], []>} : vector<8x8xbf16>, vector<8x8xbf16>, vector<8x8xf32> -> vector<8x8xf32>
    %16 = arith.truncf %15 : vector<8x8xf32> to vector<8x8xbf16>
    %cst_16 = arith.constant dense<0.000000e+00> : vector<8x8xf32>
    %17 = tpu.matmul %12, %11, %cst_16 {dimension_numbers = #tpu.dot_dimension_numbers<[1], [0], [0], [1], [0, 0, 1, 1], [], []>} : vector<8x8xbf16>, vector<8x8xbf16>, vector<8x8xf32> -> vector<8x8xf32>
    %18 = arith.truncf %17 : vector<8x8xf32> to vector<8x8xbf16>
    %19 = vector.shape_cast %14 : vector<8x8xbf16> to vector<1x8x8xbf16>
    %20 = vector.shape_cast %16 : vector<8x8xbf16> to vector<1x8x8xbf16>
    %21 = vector.shape_cast %18 : vector<8x8xbf16> to vector<1x8x8xbf16>
    "tpu.trace_start"() <{level = 10 : i32, message = "bqd,bkd->bqk"}> : () -> ()
    %cst_17 = arith.constant dense<0.000000e+00> : vector<1x8x8xf32>
    %22 = tpu.matmul %19, %20, %cst_17 {dimension_numbers = #tpu.dot_dimension_numbers<[2], [2], [1], [1], [0, 0, 0, 1, 1, 1], [0], [0]>} : vector<1x8x8xbf16>, vector<1x8x8xbf16>, vector<1x8x8xf32> -> vector<1x8x8xf32>
    "tpu.trace_stop"() : () -> ()
    %23 = vector.broadcast %5 : vector<1x1x8xf32> to vector<1x8x8xf32>
    %24 = arith.addf %22, %23 : vector<1x8x8xf32>
    %cst_18 = arith.constant dense<0xFF800000> : vector<1x8xf32>
    %25 = vector.multi_reduction <maximumf>, %24, %cst_18 [2] : vector<1x8x8xf32> to vector<1x8xf32>
    %26 = vector.shape_cast %25 : vector<1x8xf32> to vector<1x8x1xf32>
    %27 = vector.broadcast %26 : vector<1x8x1xf32> to vector<1x8x8xf32>
    %28 = arith.subf %24, %27 : vector<1x8x8xf32>
    %29 = math.exp %28 : vector<1x8x8xf32>
    %cst_19 = arith.constant dense<0.000000e+00> : vector<1x8xf32>
    %30 = vector.multi_reduction <add>, %29, %cst_19 [2] : vector<1x8x8xf32> to vector<1x8xf32>
    %31 = vector.shape_cast %30 : vector<1x8xf32> to vector<1x8x1xf32>
    %32 = tpu.reciprocal %31 {approx = true} : vector<1x8x1xf32> -> vector<1x8x1xf32>
    %33 = vector.broadcast %32 : vector<1x8x1xf32> to vector<1x8x8xf32>
    %34 = arith.mulf %29, %33 : vector<1x8x8xf32>
    %35 = arith.truncf %34 : vector<1x8x8xf32> to vector<1x8x8xbf16>
    "tpu.trace_start"() <{level = 10 : i32, message = "bqk,bkd->bqd"}> : () -> ()
    %cst_20 = arith.constant dense<0.000000e+00> : vector<1x8x8xf32>
    %36 = tpu.matmul %35, %21, %cst_20 {dimension_numbers = #tpu.dot_dimension_numbers<[2], [1], [1], [2], [0, 0, 0, 1, 1, 2], [0], [0]>} : vector<1x8x8xbf16>, vector<1x8x8xbf16>, vector<1x8x8xf32> -> vector<1x8x8xf32>
    "tpu.trace_stop"() : () -> ()
    %37 = vector.shape_cast %36 : vector<1x8x8xf32> to vector<8x8xf32>
    %38 = arith.truncf %37 : vector<8x8xf32> to vector<8x8xbf16>
    %c0_21 = arith.constant 0 : index
    %c0_22 = arith.constant 0 : index
    %c0_23 = arith.constant 0 : index
    %c0_24 = arith.constant 0 : index
    %39 = vector.load %arg5[%c0_21, %c0_22, %c0_23, %c0_24] : memref<1x4x8x32xbf16, #tpu.memory_space<vmem>>, vector<1x1x8x32xbf16>
    %40 = vector.shape_cast %39 : vector<1x1x8x32xbf16> to vector<8x32xbf16>
    %cst_25 = arith.constant dense<0.000000e+00> : vector<8x32xf32>
    %41 = tpu.matmul %38, %40, %cst_25 {dimension_numbers = #tpu.dot_dimension_numbers<[1], [0], [0], [1], [0, 0, 1, 1], [], []>} : vector<8x8xbf16>, vector<8x32xbf16>, vector<8x32xf32> -> vector<8x32xf32>
    %42 = vector.extract_strided_slice %4 {offsets = [0, 8], sizes = [8, 8], strides = [1, 1]} : vector<8x32xbf16> to vector<8x8xbf16>
    %cst_26 = arith.constant dense<0.000000e+00> : vector<8x8xf32>
    %43 = tpu.matmul %42, %7, %cst_26 {dimension_numbers = #tpu.dot_dimension_numbers<[1], [0], [0], [1], [0, 0, 1, 1], [], []>} : vector<8x8xbf16>, vector<8x8xbf16>, vector<8x8xf32> -> vector<8x8xf32>
    %44 = arith.truncf %43 : vector<8x8xf32> to vector<8x8xbf16>
    %cst_27 = arith.constant dense<0.000000e+00> : vector<8x8xf32>
    %45 = tpu.matmul %42, %9, %cst_27 {dimension_numbers = #tpu.dot_dimension_numbers<[1], [0], [0], [1], [0, 0, 1, 1], [], []>} : vector<8x8xbf16>, vector<8x8xbf16>, vector<8x8xf32> -> vector<8x8xf32>
    %46 = arith.truncf %45 : vector<8x8xf32> to vector<8x8xbf16>
    %cst_28 = arith.constant dense<0.000000e+00> : vector<8x8xf32>
    %47 = tpu.matmul %42, %11, %cst_28 {dimension_numbers = #tpu.dot_dimension_numbers<[1], [0], [0], [1], [0, 0, 1, 1], [], []>} : vector<8x8xbf16>, vector<8x8xbf16>, vector<8x8xf32> -> vector<8x8xf32>
    %48 = arith.truncf %47 : vector<8x8xf32> to vector<8x8xbf16>
    %49 = vector.shape_cast %44 : vector<8x8xbf16> to vector<1x8x8xbf16>
    %50 = vector.shape_cast %46 : vector<8x8xbf16> to vector<1x8x8xbf16>
    %51 = vector.shape_cast %48 : vector<8x8xbf16> to vector<1x8x8xbf16>
    "tpu.trace_start"() <{level = 10 : i32, message = "bqd,bkd->bqk"}> : () -> ()
    %cst_29 = arith.constant dense<0.000000e+00> : vector<1x8x8xf32>
    %52 = tpu.matmul %49, %50, %cst_29 {dimension_numbers = #tpu.dot_dimension_numbers<[2], [2], [1], [1], [0, 0, 0, 1, 1, 1], [0], [0]>} : vector<1x8x8xbf16>, vector<1x8x8xbf16>, vector<1x8x8xf32> -> vector<1x8x8xf32>
    "tpu.trace_stop"() : () -> ()
    %53 = vector.broadcast %5 : vector<1x1x8xf32> to vector<1x8x8xf32>
    %54 = arith.addf %52, %53 : vector<1x8x8xf32>
    %cst_30 = arith.constant dense<0xFF800000> : vector<1x8xf32>
    %55 = vector.multi_reduction <maximumf>, %54, %cst_30 [2] : vector<1x8x8xf32> to vector<1x8xf32>
    %56 = vector.shape_cast %55 : vector<1x8xf32> to vector<1x8x1xf32>
    %57 = vector.broadcast %56 : vector<1x8x1xf32> to vector<1x8x8xf32>
    %58 = arith.subf %54, %57 : vector<1x8x8xf32>
    %59 = math.exp %58 : vector<1x8x8xf32>
    %cst_31 = arith.constant dense<0.000000e+00> : vector<1x8xf32>
    %60 = vector.multi_reduction <add>, %59, %cst_31 [2] : vector<1x8x8xf32> to vector<1x8xf32>
    %61 = vector.shape_cast %60 : vector<1x8xf32> to vector<1x8x1xf32>
    %62 = tpu.reciprocal %61 {approx = true} : vector<1x8x1xf32> -> vector<1x8x1xf32>
    %63 = vector.broadcast %62 : vector<1x8x1xf32> to vector<1x8x8xf32>
    %64 = arith.mulf %59, %63 : vector<1x8x8xf32>
    %65 = arith.truncf %64 : vector<1x8x8xf32> to vector<1x8x8xbf16>
    "tpu.trace_start"() <{level = 10 : i32, message = "bqk,bkd->bqd"}> : () -> ()
    %cst_32 = arith.constant dense<0.000000e+00> : vector<1x8x8xf32>
    %66 = tpu.matmul %65, %51, %cst_32 {dimension_numbers = #tpu.dot_dimension_numbers<[2], [1], [1], [2], [0, 0, 0, 1, 1, 2], [0], [0]>} : vector<1x8x8xbf16>, vector<1x8x8xbf16>, vector<1x8x8xf32> -> vector<1x8x8xf32>
    "tpu.trace_stop"() : () -> ()
    %67 = vector.shape_cast %66 : vector<1x8x8xf32> to vector<8x8xf32>
    %68 = arith.truncf %67 : vector<8x8xf32> to vector<8x8xbf16>
    %c0_33 = arith.constant 0 : index
    %c1_34 = arith.constant 1 : index
    %c0_35 = arith.constant 0 : index
    %c0_36 = arith.constant 0 : index
    %69 = vector.load %arg5[%c0_33, %c1_34, %c0_35, %c0_36] : memref<1x4x8x32xbf16, #tpu.memory_space<vmem>>, vector<1x1x8x32xbf16>
    %70 = vector.shape_cast %69 : vector<1x1x8x32xbf16> to vector<8x32xbf16>
    %cst_37 = arith.constant dense<0.000000e+00> : vector<8x32xf32>
    %71 = tpu.matmul %68, %70, %cst_37 {dimension_numbers = #tpu.dot_dimension_numbers<[1], [0], [0], [1], [0, 0, 1, 1], [], []>} : vector<8x8xbf16>, vector<8x32xbf16>, vector<8x32xf32> -> vector<8x32xf32>
    %72 = arith.addf %41, %71 : vector<8x32xf32>
    %73 = vector.extract_strided_slice %4 {offsets = [0, 16], sizes = [8, 8], strides = [1, 1]} : vector<8x32xbf16> to vector<8x8xbf16>
    %cst_38 = arith.constant dense<0.000000e+00> : vector<8x8xf32>
    %74 = tpu.matmul %73, %7, %cst_38 {dimension_numbers = #tpu.dot_dimension_numbers<[1], [0], [0], [1], [0, 0, 1, 1], [], []>} : vector<8x8xbf16>, vector<8x8xbf16>, vector<8x8xf32> -> vector<8x8xf32>
    %75 = arith.truncf %74 : vector<8x8xf32> to vector<8x8xbf16>
    %cst_39 = arith.constant dense<0.000000e+00> : vector<8x8xf32>
    %76 = tpu.matmul %73, %9, %cst_39 {dimension_numbers = #tpu.dot_dimension_numbers<[1], [0], [0], [1], [0, 0, 1, 1], [], []>} : vector<8x8xbf16>, vector<8x8xbf16>, vector<8x8xf32> -> vector<8x8xf32>
    %77 = arith.truncf %76 : vector<8x8xf32> to vector<8x8xbf16>
    %cst_40 = arith.constant dense<0.000000e+00> : vector<8x8xf32>
    %78 = tpu.matmul %73, %11, %cst_40 {dimension_numbers = #tpu.dot_dimension_numbers<[1], [0], [0], [1], [0, 0, 1, 1], [], []>} : vector<8x8xbf16>, vector<8x8xbf16>, vector<8x8xf32> -> vector<8x8xf32>
    %79 = arith.truncf %78 : vector<8x8xf32> to vector<8x8xbf16>
    %80 = vector.shape_cast %75 : vector<8x8xbf16> to vector<1x8x8xbf16>
    %81 = vector.shape_cast %77 : vector<8x8xbf16> to vector<1x8x8xbf16>
    %82 = vector.shape_cast %79 : vector<8x8xbf16> to vector<1x8x8xbf16>
    "tpu.trace_start"() <{level = 10 : i32, message = "bqd,bkd->bqk"}> : () -> ()
    %cst_41 = arith.constant dense<0.000000e+00> : vector<1x8x8xf32>
    %83 = tpu.matmul %80, %81, %cst_41 {dimension_numbers = #tpu.dot_dimension_numbers<[2], [2], [1], [1], [0, 0, 0, 1, 1, 1], [0], [0]>} : vector<1x8x8xbf16>, vector<1x8x8xbf16>, vector<1x8x8xf32> -> vector<1x8x8xf32>
    "tpu.trace_stop"() : () -> ()
    %84 = vector.broadcast %5 : vector<1x1x8xf32> to vector<1x8x8xf32>
    %85 = arith.addf %83, %84 : vector<1x8x8xf32>
    %cst_42 = arith.constant dense<0xFF800000> : vector<1x8xf32>
    %86 = vector.multi_reduction <maximumf>, %85, %cst_42 [2] : vector<1x8x8xf32> to vector<1x8xf32>
    %87 = vector.shape_cast %86 : vector<1x8xf32> to vector<1x8x1xf32>
    %88 = vector.broadcast %87 : vector<1x8x1xf32> to vector<1x8x8xf32>
    %89 = arith.subf %85, %88 : vector<1x8x8xf32>
    %90 = math.exp %89 : vector<1x8x8xf32>
    %cst_43 = arith.constant dense<0.000000e+00> : vector<1x8xf32>
    %91 = vector.multi_reduction <add>, %90, %cst_43 [2] : vector<1x8x8xf32> to vector<1x8xf32>
    %92 = vector.shape_cast %91 : vector<1x8xf32> to vector<1x8x1xf32>
    %93 = tpu.reciprocal %92 {approx = true} : vector<1x8x1xf32> -> vector<1x8x1xf32>
    %94 = vector.broadcast %93 : vector<1x8x1xf32> to vector<1x8x8xf32>
    %95 = arith.mulf %90, %94 : vector<1x8x8xf32>
    %96 = arith.truncf %95 : vector<1x8x8xf32> to vector<1x8x8xbf16>
    "tpu.trace_start"() <{level = 10 : i32, message = "bqk,bkd->bqd"}> : () -> ()
    %cst_44 = arith.constant dense<0.000000e+00> : vector<1x8x8xf32>
    %97 = tpu.matmul %96, %82, %cst_44 {dimension_numbers = #tpu.dot_dimension_numbers<[2], [1], [1], [2], [0, 0, 0, 1, 1, 2], [0], [0]>} : vector<1x8x8xbf16>, vector<1x8x8xbf16>, vector<1x8x8xf32> -> vector<1x8x8xf32>
    "tpu.trace_stop"() : () -> ()
    %98 = vector.shape_cast %97 : vector<1x8x8xf32> to vector<8x8xf32>
    %99 = arith.truncf %98 : vector<8x8xf32> to vector<8x8xbf16>
    %c0_45 = arith.constant 0 : index
    %c2_46 = arith.constant 2 : index
    %c0_47 = arith.constant 0 : index
    %c0_48 = arith.constant 0 : index
    %100 = vector.load %arg5[%c0_45, %c2_46, %c0_47, %c0_48] : memref<1x4x8x32xbf16, #tpu.memory_space<vmem>>, vector<1x1x8x32xbf16>
    %101 = vector.shape_cast %100 : vector<1x1x8x32xbf16> to vector<8x32xbf16>
    %cst_49 = arith.constant dense<0.000000e+00> : vector<8x32xf32>
    %102 = tpu.matmul %99, %101, %cst_49 {dimension_numbers = #tpu.dot_dimension_numbers<[1], [0], [0], [1], [0, 0, 1, 1], [], []>} : vector<8x8xbf16>, vector<8x32xbf16>, vector<8x32xf32> -> vector<8x32xf32>
    %103 = arith.addf %72, %102 : vector<8x32xf32>
    %104 = vector.extract_strided_slice %4 {offsets = [0, 24], sizes = [8, 8], strides = [1, 1]} : vector<8x32xbf16> to vector<8x8xbf16>
    %cst_50 = arith.constant dense<0.000000e+00> : vector<8x8xf32>
    %105 = tpu.matmul %104, %7, %cst_50 {dimension_numbers = #tpu.dot_dimension_numbers<[1], [0], [0], [1], [0, 0, 1, 1], [], []>} : vector<8x8xbf16>, vector<8x8xbf16>, vector<8x8xf32> -> vector<8x8xf32>
    %106 = arith.truncf %105 : vector<8x8xf32> to vector<8x8xbf16>
    %cst_51 = arith.constant dense<0.000000e+00> : vector<8x8xf32>
    %107 = tpu.matmul %104, %9, %cst_51 {dimension_numbers = #tpu.dot_dimension_numbers<[1], [0], [0], [1], [0, 0, 1, 1], [], []>} : vector<8x8xbf16>, vector<8x8xbf16>, vector<8x8xf32> -> vector<8x8xf32>
    %108 = arith.truncf %107 : vector<8x8xf32> to vector<8x8xbf16>
    %cst_52 = arith.constant dense<0.000000e+00> : vector<8x8xf32>
    %109 = tpu.matmul %104, %11, %cst_52 {dimension_numbers = #tpu.dot_dimension_numbers<[1], [0], [0], [1], [0, 0, 1, 1], [], []>} : vector<8x8xbf16>, vector<8x8xbf16>, vector<8x8xf32> -> vector<8x8xf32>
    %110 = arith.truncf %109 : vector<8x8xf32> to vector<8x8xbf16>
    %111 = vector.shape_cast %106 : vector<8x8xbf16> to vector<1x8x8xbf16>
    %112 = vector.shape_cast %108 : vector<8x8xbf16> to vector<1x8x8xbf16>
    %113 = vector.shape_cast %110 : vector<8x8xbf16> to vector<1x8x8xbf16>
    "tpu.trace_start"() <{level = 10 : i32, message = "bqd,bkd->bqk"}> : () -> ()
    %cst_53 = arith.constant dense<0.000000e+00> : vector<1x8x8xf32>
    %114 = tpu.matmul %111, %112, %cst_53 {dimension_numbers = #tpu.dot_dimension_numbers<[2], [2], [1], [1], [0, 0, 0, 1, 1, 1], [0], [0]>} : vector<1x8x8xbf16>, vector<1x8x8xbf16>, vector<1x8x8xf32> -> vector<1x8x8xf32>
    "tpu.trace_stop"() : () -> ()
    %115 = vector.broadcast %5 : vector<1x1x8xf32> to vector<1x8x8xf32>
    %116 = arith.addf %114, %115 : vector<1x8x8xf32>
    %cst_54 = arith.constant dense<0xFF800000> : vector<1x8xf32>
    %117 = vector.multi_reduction <maximumf>, %116, %cst_54 [2] : vector<1x8x8xf32> to vector<1x8xf32>
    %118 = vector.shape_cast %117 : vector<1x8xf32> to vector<1x8x1xf32>
    %119 = vector.broadcast %118 : vector<1x8x1xf32> to vector<1x8x8xf32>
    %120 = arith.subf %116, %119 : vector<1x8x8xf32>
    %121 = math.exp %120 : vector<1x8x8xf32>
    %cst_55 = arith.constant dense<0.000000e+00> : vector<1x8xf32>
    %122 = vector.multi_reduction <add>, %121, %cst_55 [2] : vector<1x8x8xf32> to vector<1x8xf32>
    %123 = vector.shape_cast %122 : vector<1x8xf32> to vector<1x8x1xf32>
    %124 = tpu.reciprocal %123 {approx = true} : vector<1x8x1xf32> -> vector<1x8x1xf32>
    %125 = vector.broadcast %124 : vector<1x8x1xf32> to vector<1x8x8xf32>
    %126 = arith.mulf %121, %125 : vector<1x8x8xf32>
    %127 = arith.truncf %126 : vector<1x8x8xf32> to vector<1x8x8xbf16>
    "tpu.trace_start"() <{level = 10 : i32, message = "bqk,bkd->bqd"}> : () -> ()
    %cst_56 = arith.constant dense<0.000000e+00> : vector<1x8x8xf32>
    %128 = tpu.matmul %127, %113, %cst_56 {dimension_numbers = #tpu.dot_dimension_numbers<[2], [1], [1], [2], [0, 0, 0, 1, 1, 2], [0], [0]>} : vector<1x8x8xbf16>, vector<1x8x8xbf16>, vector<1x8x8xf32> -> vector<1x8x8xf32>
    "tpu.trace_stop"() : () -> ()
    %129 = vector.shape_cast %128 : vector<1x8x8xf32> to vector<8x8xf32>
    %130 = arith.truncf %129 : vector<8x8xf32> to vector<8x8xbf16>
    %c0_57 = arith.constant 0 : index
    %c3 = arith.constant 3 : index
    %c0_58 = arith.constant 0 : index
    %c0_59 = arith.constant 0 : index
    %131 = vector.load %arg5[%c0_57, %c3, %c0_58, %c0_59] : memref<1x4x8x32xbf16, #tpu.memory_space<vmem>>, vector<1x1x8x32xbf16>
    %132 = vector.shape_cast %131 : vector<1x1x8x32xbf16> to vector<8x32xbf16>
    %cst_60 = arith.constant dense<0.000000e+00> : vector<8x32xf32>
    %133 = tpu.matmul %130, %132, %cst_60 {dimension_numbers = #tpu.dot_dimension_numbers<[1], [0], [0], [1], [0, 0, 1, 1], [], []>} : vector<8x8xbf16>, vector<8x32xbf16>, vector<8x32xf32> -> vector<8x32xf32>
    %134 = arith.addf %103, %133 : vector<8x32xf32>
    %c0_61 = arith.constant 0 : index
    %c0_62 = arith.constant 0 : index
    %c0_63 = arith.constant 0 : index
    %135 = vector.load %arg6[%c0_61, %c0_62, %c0_63] : memref<1x8x32xf32, #tpu.memory_space<vmem>>, vector<1x8x32xf32>
    %136 = vector.shape_cast %135 : vector<1x8x32xf32> to vector<8x32xf32>
    %137 = vector.extract_strided_slice %136 {offsets = [0, 0], sizes = [1, 32], strides = [1, 1]} : vector<8x32xf32> to vector<1x32xf32>
    %138 = vector.extract_strided_slice %136 {offsets = [1, 0], sizes = [1, 32], strides = [1, 1]} : vector<8x32xf32> to vector<1x32xf32>
    %139 = vector.extract_strided_slice %136 {offsets = [2, 0], sizes = [1, 32], strides = [1, 1]} : vector<8x32xf32> to vector<1x32xf32>
    %140 = vector.extract_strided_slice %136 {offsets = [3, 0], sizes = [1, 32], strides = [1, 1]} : vector<8x32xf32> to vector<1x32xf32>
    %141 = vector.extract_strided_slice %136 {offsets = [4, 0], sizes = [1, 32], strides = [1, 1]} : vector<8x32xf32> to vector<1x32xf32>
    %142 = vector.extract_strided_slice %136 {offsets = [5, 0], sizes = [1, 32], strides = [1, 1]} : vector<8x32xf32> to vector<1x32xf32>
    %143 = vector.broadcast %137 : vector<1x32xf32> to vector<8x32xf32>
    %144 = arith.addf %134, %143 : vector<8x32xf32>
    %145 = arith.addf %144, %3 : vector<8x32xf32>
    %cst_64 = arith.constant dense<0.000000e+00> : vector<8xf32>
    %146 = vector.multi_reduction <add>, %145, %cst_64 [1] : vector<8x32xf32> to vector<8xf32>
    %147 = vector.shape_cast %146 : vector<8xf32> to vector<8x1xf32>
    %cst_65 = arith.constant 3.200000e+01 : f32
    %148 = vector.broadcast %cst_65 : f32 to vector<8x1xf32>
    %149 = arith.divf %147, %148 : vector<8x1xf32>
    %150 = vector.broadcast %149 : vector<8x1xf32> to vector<8x32xf32>
    %151 = arith.subf %145, %150 : vector<8x32xf32>
    %152 = arith.mulf %151, %151 : vector<8x32xf32>
    %cst_66 = arith.constant dense<0.000000e+00> : vector<8xf32>
    %153 = vector.multi_reduction <add>, %152, %cst_66 [1] : vector<8x32xf32> to vector<8xf32>
    %154 = vector.shape_cast %153 : vector<8xf32> to vector<8x1xf32>
    %cst_67 = arith.constant 3.200000e+01 : f32
    %155 = vector.broadcast %cst_67 : f32 to vector<8x1xf32>
    %156 = arith.divf %154, %155 : vector<8x1xf32>
    %157 = vector.broadcast %149 : vector<8x1xf32> to vector<8x32xf32>
    %158 = arith.subf %145, %157 : vector<8x32xf32>
    %cst_68 = arith.constant 9.99999974E-6 : f32
    %159 = vector.broadcast %cst_68 : f32 to vector<8x1xf32>
    %160 = arith.addf %156, %159 : vector<8x1xf32>
    %161 = math.rsqrt %160 : vector<8x1xf32>
    %162 = vector.broadcast %161 : vector<8x1xf32> to vector<8x32xf32>
    %163 = arith.mulf %158, %162 : vector<8x32xf32>
    %164 = vector.broadcast %138 : vector<1x32xf32> to vector<8x32xf32>
    %165 = arith.mulf %163, %164 : vector<8x32xf32>
    %166 = vector.broadcast %139 : vector<1x32xf32> to vector<8x32xf32>
    %167 = arith.addf %165, %166 : vector<8x32xf32>
    %168 = arith.truncf %167 : vector<8x32xf32> to vector<8x32xbf16>
    %c0_69 = arith.constant 0 : index
    %c0_70 = arith.constant 0 : index
    %c0_71 = arith.constant 0 : index
    %169 = vector.load %arg7[%c0_69, %c0_70, %c0_71] : memref<1x32x128xbf16, #tpu.memory_space<vmem>>, vector<1x32x128xbf16>
    %170 = vector.shape_cast %169 : vector<1x32x128xbf16> to vector<32x128xbf16>
    %cst_72 = arith.constant dense<0.000000e+00> : vector<8x128xf32>
    %171 = tpu.matmul %168, %170, %cst_72 {dimension_numbers = #tpu.dot_dimension_numbers<[1], [0], [0], [1], [0, 0, 1, 1], [], []>} : vector<8x32xbf16>, vector<32x128xbf16>, vector<8x128xf32> -> vector<8x128xf32>
    %c0_73 = arith.constant 0 : index
    %c0_74 = arith.constant 0 : index
    %c0_75 = arith.constant 0 : index
    %172 = vector.load %arg8[%c0_73, %c0_74, %c0_75] : memref<1x1x128xf32, #tpu.memory_space<vmem>>, vector<1x1x128xf32>
    %173 = vector.shape_cast %172 : vector<1x1x128xf32> to vector<1x128xf32>
    %174 = vector.broadcast %173 : vector<1x128xf32> to vector<8x128xf32>
    %175 = arith.addf %171, %174 : vector<8x128xf32>
    %cst_76 = arith.constant 0.000000e+00 : f32
    %176 = vector.broadcast %cst_76 : f32 to vector<8x128xf32>
    %177 = arith.maximumf %175, %176 : vector<8x128xf32>
    %178 = arith.truncf %177 : vector<8x128xf32> to vector<8x128xbf16>
    %c0_77 = arith.constant 0 : index
    %c0_78 = arith.constant 0 : index
    %c0_79 = arith.constant 0 : index
    %179 = vector.load %arg9[%c0_77, %c0_78, %c0_79] : memref<1x128x32xbf16, #tpu.memory_space<vmem>>, vector<1x128x32xbf16>
    %180 = vector.shape_cast %179 : vector<1x128x32xbf16> to vector<128x32xbf16>
    %cst_80 = arith.constant dense<0.000000e+00> : vector<8x32xf32>
    %181 = tpu.matmul %178, %180, %cst_80 {dimension_numbers = #tpu.dot_dimension_numbers<[1], [0], [0], [1], [0, 0, 1, 1], [], []>} : vector<8x128xbf16>, vector<128x32xbf16>, vector<8x32xf32> -> vector<8x32xf32>
    %182 = vector.broadcast %140 : vector<1x32xf32> to vector<8x32xf32>
    %183 = arith.addf %181, %182 : vector<8x32xf32>
    %184 = arith.addf %183, %167 : vector<8x32xf32>
    %cst_81 = arith.constant dense<0.000000e+00> : vector<8xf32>
    %185 = vector.multi_reduction <add>, %184, %cst_81 [1] : vector<8x32xf32> to vector<8xf32>
    %186 = vector.shape_cast %185 : vector<8xf32> to vector<8x1xf32>
    %cst_82 = arith.constant 3.200000e+01 : f32
    %187 = vector.broadcast %cst_82 : f32 to vector<8x1xf32>
    %188 = arith.divf %186, %187 : vector<8x1xf32>
    %189 = vector.broadcast %188 : vector<8x1xf32> to vector<8x32xf32>
    %190 = arith.subf %184, %189 : vector<8x32xf32>
    %191 = arith.mulf %190, %190 : vector<8x32xf32>
    %cst_83 = arith.constant dense<0.000000e+00> : vector<8xf32>
    %192 = vector.multi_reduction <add>, %191, %cst_83 [1] : vector<8x32xf32> to vector<8xf32>
    %193 = vector.shape_cast %192 : vector<8xf32> to vector<8x1xf32>
    %cst_84 = arith.constant 3.200000e+01 : f32
    %194 = vector.broadcast %cst_84 : f32 to vector<8x1xf32>
    %195 = arith.divf %193, %194 : vector<8x1xf32>
    %196 = vector.broadcast %188 : vector<8x1xf32> to vector<8x32xf32>
    %197 = arith.subf %184, %196 : vector<8x32xf32>
    %cst_85 = arith.constant 9.99999974E-6 : f32
    %198 = vector.broadcast %cst_85 : f32 to vector<8x1xf32>
    %199 = arith.addf %195, %198 : vector<8x1xf32>
    %200 = math.rsqrt %199 : vector<8x1xf32>
    %201 = vector.broadcast %200 : vector<8x1xf32> to vector<8x32xf32>
    %202 = arith.mulf %197, %201 : vector<8x32xf32>
    %203 = vector.broadcast %141 : vector<1x32xf32> to vector<8x32xf32>
    %204 = arith.mulf %202, %203 : vector<8x32xf32>
    %205 = vector.broadcast %142 : vector<1x32xf32> to vector<8x32xf32>
    %206 = arith.addf %204, %205 : vector<8x32xf32>
    %c0_86 = arith.constant 0 : index
    %c0_87 = arith.constant 0 : index
    %207 = vector.load %arg11[%c0_86, %c0_87] : memref<8x32xf32, #tpu.memory_space<vmem>>, vector<8x32xf32>
    tpu.vector_store %arg11[%c0_86, %c0_87], %206 {strides = array<i32>} : memref<8x32xf32, #tpu.memory_space<vmem>>, vector<8x32xf32>,
    %c1_i32 = arith.constant 1 : i32
    %208 = arith.cmpi eq, %arg1, %c1_i32 : i32
    %209 = arith.extui %208 : i1 to i32
    %c0_i32_88 = arith.constant 0 : i32
    %210 = arith.cmpi ne, %209, %c0_i32_88 : i32
    scf.if %210 {
      %211 = vector.shape_cast %206 : vector<8x32xf32> to vector<1x8x32xf32>
      %c0_89 = arith.constant 0 : index
      %c0_90 = arith.constant 0 : index
      %c0_91 = arith.constant 0 : index
      %212 = vector.load %arg10[%c0_89, %c0_90, %c0_91] : memref<1x8x32xf32, #tpu.memory_space<vmem>>, vector<1x8x32xf32>
      tpu.vector_store %arg10[%c0_89, %c0_90, %c0_91], %211 {strides = array<i32>} : memref<1x8x32xf32, #tpu.memory_space<vmem>>, vector<1x8x32xf32>,
    } else {
    }
    return
  }
  func.func @transform_0(%arg0: i32, %arg1: i32) -> (i32, i32, i32) {
    %c0_i32 = arith.constant 0 : i32
    %c0_i32_0 = arith.constant 0 : i32
    %c0_i32_1 = arith.constant 0 : i32
    return %arg0, %c0_i32, %c0_i32_0 : i32, i32, i32
  }
  func.func @transform_1(%arg0: i32, %arg1: i32) -> (i32, i32, i32) {
    %c0_i32 = arith.constant 0 : i32
    %c0_i32_0 = arith.constant 0 : i32
    %c0_i32_1 = arith.constant 0 : i32
    return %arg0, %c0_i32, %c0_i32_0 : i32, i32, i32
  }
  func.func @transform_2(%arg0: i32, %arg1: i32) -> (i32, i32, i32, i32) {
    %c0_i32 = arith.constant 0 : i32
    %c0_i32_0 = arith.constant 0 : i32
    %c0_i32_1 = arith.constant 0 : i32
    %c0_i32_2 = arith.constant 0 : i32
    return %arg1, %c0_i32, %c0_i32_0, %c0_i32_1 : i32, i32, i32, i32
  }
  func.func @transform_3(%arg0: i32, %arg1: i32) -> (i32, i32, i32, i32) {
    %c0_i32 = arith.constant 0 : i32
    %c0_i32_0 = arith.constant 0 : i32
    %c0_i32_1 = arith.constant 0 : i32
    %c0_i32_2 = arith.constant 0 : i32
    return %arg1, %c0_i32, %c0_i32_0, %c0_i32_1 : i32, i32, i32, i32
  }
  func.func @transform_4(%arg0: i32, %arg1: i32) -> (i32, i32, i32) {
    %c0_i32 = arith.constant 0 : i32
    %c0_i32_0 = arith.constant 0 : i32
    %c0_i32_1 = arith.constant 0 : i32
    return %arg1, %c0_i32, %c0_i32_0 : i32, i32, i32
  }
  func.func @transform_5(%arg0: i32, %arg1: i32) -> (i32, i32, i32) {
    %c0_i32 = arith.constant 0 : i32
    %c0_i32_0 = arith.constant 0 : i32
    %c0_i32_1 = arith.constant 0 : i32
    return %arg1, %c0_i32, %c0_i32_0 : i32, i32, i32
  }
  func.func @transform_6(%arg0: i32, %arg1: i32) -> (i32, i32, i32) {
    %c0_i32 = arith.constant 0 : i32
    %c0_i32_0 = arith.constant 0 : i32
    %c0_i32_1 = arith.constant 0 : i32
    return %arg1, %c0_i32, %c0_i32_0 : i32, i32, i32
  }
  func.func @transform_7(%arg0: i32, %arg1: i32) -> (i32, i32, i32) {
    %c0_i32 = arith.constant 0 : i32
    %c0_i32_0 = arith.constant 0 : i32
    %c0_i32_1 = arith.constant 0 : i32
    return %arg1, %c0_i32, %c0_i32_0 : i32, i32, i32
  }
  func.func @transform_8(%arg0: i32, %arg1: i32) -> (i32, i32, i32) {
    %c0_i32 = arith.constant 0 : i32
    %c0_i32_0 = arith.constant 0 : i32
    %c0_i32_1 = arith.constant 0 : i32
    return %arg0, %c0_i32, %c0_i32_0 : i32, i32, i32
  }
}

</mosaic_0001>

<llo_original>
// kernel: tpu_custom_call.1
$region0: #{tpu_custom_call.1}
  #allocation0 [shape = 'u32[]', space=smem, size = 0x4, offset = 0x4, fixed_abs, tag = 'smem constant byte address 0x4 - core index']
  #allocation1 [shape = 'u32[72,128]{1,0:T(1,128)}', space=vmem, size = 0x9000, scoped, tag = 'internal scratch']
  #allocation2 [shape = 'f32[8,32]{1,0:T(8,128)}', space=vmem, size = 0x1000, scoped, tag = 'scratch operand']
  %s0 = inlined_call_operand.vmem [shape: f32[2,8,32], index: 0, kind: input, shape index: {}]
  %s1 = inlined_call_operand.vmem [shape: f32[2,1,8], index: 1, kind: input, shape index: {}]
  %s2 = inlined_call_operand.vmem [shape: bf16[2,3,8,8], index: 2, kind: input, shape index: {}]
  %s3 = inlined_call_operand.vmem [shape: bf16[2,4,8,32], index: 3, kind: input, shape index: {}]
  %s4 = inlined_call_operand.vmem [shape: f32[2,8,32], index: 4, kind: input, shape index: {}]
  %s5 = inlined_call_operand.vmem [shape: bf16[2,32,128], index: 5, kind: input, shape index: {}]
  %s6 = inlined_call_operand.vmem [shape: f32[2,1,128], index: 6, kind: input, shape index: {}]
  %s7 = inlined_call_operand.vmem [shape: bf16[2,128,32], index: 7, kind: input, shape index: {}]
  %s8 = inlined_call_operand.hbm [shape: f32[2,8,32], index: 8, kind: output, shape index: {}]
  %s9 = sld [smem:[#allocation0]]
  $region73: #{tpu_custom_call.1} parent=0
    _
  %s11 = ssub.s32 1, %s9
  %s12 = scalar_select 0, %s11, %s9
  $region1: #{tpu_custom_call.1} parent=0
    #allocation3 [shape = 'u8[8192]{0}', space=vmem, size = 0x2000, scoped, tag = 'output window, operand 0']
    #allocation4 [shape = 's32[2]{0}', space=sflag, size = 0x8, scoped, tag = 'scoped memory for tpu_custom_call.1']
    %13 = vsyncpa [#allocation4], 0
    %s14 = scalar_lea.sflag [#allocation4], 1
    %15 = vsyncpa %s14, 0
    loop: start=0, step=1, limit=6
    $region2: #{tpu_custom_call.1} parent=1 // loop_pre_header
      _
    $region3: #{tpu_custom_call.1} parent=1 // loop_header
      %s17 = sphi 0, %s21
      %p18 = scmp.ge.s32.totalorder %s17, 6
      %s24 = sphi 0, %s36
      %s25 = sphi 0, %s32
      %s26 = sphi 0, %s24
      %s27 = sphi 0, %s25
      %s28 = sphi 0, %s26
      %s29 = sphi 0, %s27
      %s39 = sphi 0, %s41
      %s42 = sphi 0, %s39
      %s43 = sphi 0, %s42
      %s59 = sphi 0, %s43
      %s65 = sphi 0, %s67
      %s68 = sphi 0, %s65
      %s69 = sphi 0, %s68
      %s85 = sphi 0, %s69
      %s91 = sphi 0, %s93
      %s94 = sphi 0, %s91
      %s95 = sphi 0, %s94
      %s111 = sphi 0, %s95
      %s117 = sphi 0, %s119
      %s120 = sphi 0, %s117
      %s121 = sphi 0, %s120
      %s137 = sphi 0, %s121
      %s143 = sphi 0, %s145
      %s146 = sphi 0, %s143
      %s147 = sphi 0, %s146
      %s163 = sphi 0, %s147
      %s169 = sphi 0, %s171
      %s172 = sphi 0, %s169
      %s173 = sphi 0, %s172
      %s189 = sphi 0, %s173
      %s195 = sphi 0, %s197
      %s198 = sphi 0, %s195
      %s199 = sphi 0, %s198
      %s215 = sphi 0, %s199
      %s221 = sphi 0, %s223
      %s224 = sphi 0, %s221
      %s225 = sphi 0, %s224
      %s241 = sphi 0, %s225
      %s247 = sphi 0, %s249
      %s250 = sphi 0, %s247
      %s251 = sphi 0, %s250
      %s267 = sphi 0, %s251
    $region4: #{tpu_custom_call.1} parent=1 // loop_header_branch
      %20 = sbr.rel (%p18) target = $region8
    $region5: #{tpu_custom_call.1} parent=1 // loop_body
      %s22 = ssub.s32 %s17, 1
      %s23 = ssub.s32 %s17, 2
      %s30 = sadd.s32 1, %s25
      %p31 = scmp.ge.s32.totalorder %s30, 2
      %s32 = scalar_select %p31, 0, %s30
      %s33 = sadd.s32 1, %s24
      %s34 = scalar_select %p31, %s33, %s24
      %p35 = scmp.ge.s32.totalorder %s34, 2
      %s36 = scalar_select %p35, 0, %s34
      %s37 = ssub.s32 %s24, %s36
      %p38 = scmp.eq.s32.totalorder %s37, 0
      %s40 = sadd.s32 %s39, 1
      %s41 = scalar_select %p38, %s39, %s40
      %p44 = pneg %p38
      %p45 = scmp.eq.s32.totalorder %s17, 3
      %p46 = por %p44, %p45
      %p47 = scmp.ne.s32.totalorder %s39, %s42
      %p48 = scmp.eq.s32.totalorder %s17, 0
      %p49 = por %p47, %p48
      %p50 = scmp.ne.s32.totalorder %s39, %s42
      %p51 = scmp.eq.s32.totalorder %s22, 3
      %p52 = por %p50, %p51
      %p53 = scmp.ne.s32.totalorder %s42, %s43
      %p54 = scmp.eq.s32.totalorder %s22, 0
      %p55 = por %p53, %p54
      %p56 = scmp.ne.s32.totalorder %s42, %s43
      %p57 = scmp.eq.s32.totalorder %s23, 3
      %p58 = por %p56, %p57
      %p60 = scmp.ne.s32.totalorder %s43, %s59
      %p61 = scmp.eq.s32.totalorder %s23, 0
      %p62 = por %p60, %p61
      %s63 = ssub.s32 %s24, %s36
      %p64 = scmp.eq.s32.totalorder %s63, 0
      %s66 = sadd.s32 %s65, 1
      %s67 = scalar_select %p64, %s65, %s66
      %p70 = pneg %p64
      %p71 = scmp.eq.s32.totalorder %s17, 3
      %p72 = por %p70, %p71
      %p73 = scmp.ne.s32.totalorder %s65, %s68
      %p74 = scmp.eq.s32.totalorder %s17, 0
      %p75 = por %p73, %p74
      %p76 = scmp.ne.s32.totalorder %s65, %s68
      %p77 = scmp.eq.s32.totalorder %s22, 3
      %p78 = por %p76, %p77
      %p79 = scmp.ne.s32.totalorder %s68, %s69
      %p80 = scmp.eq.s32.totalorder %s22, 0
      %p81 = por %p79, %p80
      %p82 = scmp.ne.s32.totalorder %s68, %s69
      %p83 = scmp.eq.s32.totalorder %s23, 3
      %p84 = por %p82, %p83
      %p86 = scmp.ne.s32.totalorder %s69, %s85
      %p87 = scmp.eq.s32.totalorder %s23, 0
      %p88 = por %p86, %p87
      %s89 = ssub.s32 %s25, %s32
      %p90 = scmp.eq.s32.totalorder %s89, 0
      %s92 = sadd.s32 %s91, 1
      %s93 = scalar_select %p90, %s91, %s92
      %p96 = pneg %p90
      %p97 = scmp.eq.s32.totalorder %s17, 3
      %p98 = por %p96, %p97
      %p99 = scmp.ne.s32.totalorder %s91, %s94
      %p100 = scmp.eq.s32.totalorder %s17, 0
      %p101 = por %p99, %p100
      %p102 = scmp.ne.s32.totalorder %s91, %s94
      %p103 = scmp.eq.s32.totalorder %s22, 3
      %p104 = por %p102, %p103
      %p105 = scmp.ne.s32.totalorder %s94, %s95
      %p106 = scmp.eq.s32.totalorder %s22, 0
      %p107 = por %p105, %p106
      %p108 = scmp.ne.s32.totalorder %s94, %s95
      %p109 = scmp.eq.s32.totalorder %s23, 3
      %p110 = por %p108, %p109
      %p112 = scmp.ne.s32.totalorder %s95, %s111
      %p113 = scmp.eq.s32.totalorder %s23, 0
      %p114 = por %p112, %p113
      %s115 = ssub.s32 %s25, %s32
      %p116 = scmp.eq.s32.totalorder %s115, 0
      %s118 = sadd.s32 %s117, 1
      %s119 = scalar_select %p116, %s117, %s118
      %p122 = pneg %p116
      %p123 = scmp.eq.s32.totalorder %s17, 3
      %p124 = por %p122, %p123
      %p125 = scmp.ne.s32.totalorder %s117, %s120
      %p126 = scmp.eq.s32.totalorder %s17, 0
      %p127 = por %p125, %p126
      %p128 = scmp.ne.s32.totalorder %s117, %s120
      %p129 = scmp.eq.s32.totalorder %s22, 3
      %p130 = por %p128, %p129
      %p131 = scmp.ne.s32.totalorder %s120, %s121
      %p132 = scmp.eq.s32.totalorder %s22, 0
      %p133 = por %p131, %p132
      %p134 = scmp.ne.s32.totalorder %s120, %s121
      %p135 = scmp.eq.s32.totalorder %s23, 3
      %p136 = por %p134, %p135
      %p138 = scmp.ne.s32.totalorder %s121, %s137
      %p139 = scmp.eq.s32.totalorder %s23, 0
      %p140 = por %p138, %p139
      %s141 = ssub.s32 %s25, %s32
      %p142 = scmp.eq.s32.totalorder %s141, 0
      %s144 = sadd.s32 %s143, 1
      %s145 = scalar_select %p142, %s143, %s144
      %p148 = pneg %p142
      %p149 = scmp.eq.s32.totalorder %s17, 3
      %p150 = por %p148, %p149
      %p151 = scmp.ne.s32.totalorder %s143, %s146
      %p152 = scmp.eq.s32.totalorder %s17, 0
      %p153 = por %p151, %p152
      %p154 = scmp.ne.s32.totalorder %s143, %s146
      %p155 = scmp.eq.s32.totalorder %s22, 3
      %p156 = por %p154, %p155
      %p157 = scmp.ne.s32.totalorder %s146, %s147
      %p158 = scmp.eq.s32.totalorder %s22, 0
      %p159 = por %p157, %p158
      %p160 = scmp.ne.s32.totalorder %s146, %s147
      %p161 = scmp.eq.s32.totalorder %s23, 3
      %p162 = por %p160, %p161
      %p164 = scmp.ne.s32.totalorder %s147, %s163
      %p165 = scmp.eq.s32.totalorder %s23, 0
      %p166 = por %p164, %p165
      %s167 = ssub.s32 %s25, %s32
      %p168 = scmp.eq.s32.totalorder %s167, 0
      %s170 = sadd.s32 %s169, 1
      %s171 = scalar_select %p168, %s169, %s170
      %p174 = pneg %p168
      %p175 = scmp.eq.s32.totalorder %s17, 3
      %p176 = por %p174, %p175
      %p177 = scmp.ne.s32.totalorder %s169, %s172
      %p178 = scmp.eq.s32.totalorder %s17, 0
      %p179 = por %p177, %p178
      %p180 = scmp.ne.s32.totalorder %s169, %s172
      %p181 = scmp.eq.s32.totalorder %s22, 3
      %p182 = por %p180, %p181
      %p183 = scmp.ne.s32.totalorder %s172, %s173
      %p184 = scmp.eq.s32.totalorder %s22, 0
      %p185 = por %p183, %p184
      %p186 = scmp.ne.s32.totalorder %s172, %s173
      %p187 = scmp.eq.s32.totalorder %s23, 3
      %p188 = por %p186, %p187
      %p190 = scmp.ne.s32.totalorder %s173, %s189
      %p191 = scmp.eq.s32.totalorder %s23, 0
      %p192 = por %p190, %p191
      %s193 = ssub.s32 %s25, %s32
      %p194 = scmp.eq.s32.totalorder %s193, 0
      %s196 = sadd.s32 %s195, 1
      %s197 = scalar_select %p194, %s195, %s196
      %p200 = pneg %p194
      %p201 = scmp.eq.s32.totalorder %s17, 3
      %p202 = por %p200, %p201
      %p203 = scmp.ne.s32.totalorder %s195, %s198
      %p204 = scmp.eq.s32.totalorder %s17, 0
      %p205 = por %p203, %p204
      %p206 = scmp.ne.s32.totalorder %s195, %s198
      %p207 = scmp.eq.s32.totalorder %s22, 3
      %p208 = por %p206, %p207
      %p209 = scmp.ne.s32.totalorder %s198, %s199
      %p210 = scmp.eq.s32.totalorder %s22, 0
      %p211 = por %p209, %p210
      %p212 = scmp.ne.s32.totalorder %s198, %s199
      %p213 = scmp.eq.s32.totalorder %s23, 3
      %p214 = por %p212, %p213
      %p216 = scmp.ne.s32.totalorder %s199, %s215
      %p217 = scmp.eq.s32.totalorder %s23, 0
      %p218 = por %p216, %p217
      %s219 = ssub.s32 %s25, %s32
      %p220 = scmp.eq.s32.totalorder %s219, 0
      %s222 = sadd.s32 %s221, 1
      %s223 = scalar_select %p220, %s221, %s222
      %p226 = pneg %p220
      %p227 = scmp.eq.s32.totalorder %s17, 3
      %p228 = por %p226, %p227
      %p229 = scmp.ne.s32.totalorder %s221, %s224
      %p230 = scmp.eq.s32.totalorder %s17, 0
      %p231 = por %p229, %p230
      %p232 = scmp.ne.s32.totalorder %s221, %s224
      %p233 = scmp.eq.s32.totalorder %s22, 3
      %p234 = por %p232, %p233
      %p235 = scmp.ne.s32.totalorder %s224, %s225
      %p236 = scmp.eq.s32.totalorder %s22, 0
      %p237 = por %p235, %p236
      %p238 = scmp.ne.s32.totalorder %s224, %s225
      %p239 = scmp.eq.s32.totalorder %s23, 3
      %p240 = por %p238, %p239
      %p242 = scmp.ne.s32.totalorder %s225, %s241
      %p243 = scmp.eq.s32.totalorder %s23, 0
      %p244 = por %p242, %p243
      %s245 = ssub.s32 %s24, %s36
      %p246 = scmp.eq.s32.totalorder %s245, 0
      %s248 = sadd.s32 %s247, 1
      %s249 = scalar_select %p246, %s247, %s248
      %p252 = pneg %p246
      %p253 = scmp.eq.s32.totalorder %s17, 3
      %p254 = por %p252, %p253
      %p255 = scmp.ne.s32.totalorder %s247, %s250
      %p256 = scmp.eq.s32.totalorder %s17, 0
      %p257 = por %p255, %p256
      %p258 = scmp.ne.s32.totalorder %s247, %s250
      %p259 = scmp.eq.s32.totalorder %s22, 3
      %p260 = por %p258, %p259
      %p261 = scmp.ne.s32.totalorder %s250, %s251
      %p262 = scmp.eq.s32.totalorder %s22, 0
      %p263 = por %p261, %p262
      %p264 = scmp.ne.s32.totalorder %s250, %s251
      %p265 = scmp.eq.s32.totalorder %s23, 3
      %p266 = por %p264, %p265
      %p268 = scmp.ne.s32.totalorder %s251, %s267
      %p269 = scmp.eq.s32.totalorder %s23, 0
      %p270 = por %p268, %p269
      %p271 = scmp.le.s32.totalorder 1, %s17
      %p272 = scmp.lt.s32.totalorder %s17, 5
      %p273 = pnand %p271, %p272
      %p274 = pneg %p273
      // Predicated region
      $region9: #{tpu_custom_call.1} parent=5 // pred_check
        _
      $region10: #{tpu_custom_call.1} parent=5 // pred_check_branch
        %276 = sbr.rel (%p273) target = $region12
      $region11: #{tpu_custom_call.1} parent=5 // pred_region
        %s277 = ssub.s32 %s17, 1
      $region12: #{tpu_custom_call.1} parent=5 // pred_fallthru
        _
      %p278 = scmp.lt.s32.totalorder %s17, 4
      // Predicated region
      $region13: #{tpu_custom_call.1} parent=5 // pred_check
        %p279 = pneg %p278
      $region14: #{tpu_custom_call.1} parent=5 // pred_check_branch
        %281 = sbr.rel (%p279) target = $region16
      $region15: #{tpu_custom_call.1} parent=5 // pred_region
        // Predicated region
        $region17: #{tpu_custom_call.1} parent=15 // pred_check
          %p282 = pneg %p49
        $region18: #{tpu_custom_call.1} parent=15 // pred_check_branch
          %284 = sbr.rel (%p282) target = $region20
        $region19: #{tpu_custom_call.1} parent=15 // pred_region
          %p285 = scmp.lt.s32.totalorder %s24, 1
          %s286 = scalar_select %p285, %s24, 1
          %s287 = smul.addr %s286, 8
          %s288 = scalar_lea.vmem %s0, %s287
        $region20: #{tpu_custom_call.1} parent=15 // pred_fallthru
          _
        // Predicated region
        $region21: #{tpu_custom_call.1} parent=15 // pred_check
          %p289 = pneg %p75
        $region22: #{tpu_custom_call.1} parent=15 // pred_check_branch
          %291 = sbr.rel (%p289) target = $region24
        $region23: #{tpu_custom_call.1} parent=15 // pred_region
          %p292 = scmp.lt.s32.totalorder %s24, 1
          %s293 = scalar_select %p292, %s24, 1
          %s294 = scalar_lea.vmem %s1, %s293
        $region24: #{tpu_custom_call.1} parent=15 // pred_fallthru
          _
        // Predicated region
        $region25: #{tpu_custom_call.1} parent=15 // pred_check
          %p295 = pneg %p101
        $region26: #{tpu_custom_call.1} parent=15 // pred_check_branch
          %297 = sbr.rel (%p295) target = $region28
        $region27: #{tpu_custom_call.1} parent=15 // pred_region
          %p298 = scmp.lt.s32.totalorder %s25, 1
          %s299 = scalar_select %p298, %s25, 1
          %s300 = smul.addr %s299, 3
          %s301 = smul.addr %s300, 4
          %s302 = scalar_lea.vmem %s2, %s301
        $region28: #{tpu_custom_call.1} parent=15 // pred_fallthru
          _
        // Predicated region
        $region29: #{tpu_custom_call.1} parent=15 // pred_check
          %p303 = pneg %p127
        $region30: #{tpu_custom_call.1} parent=15 // pred_check_branch
          %305 = sbr.rel (%p303) target = $region32
        $region31: #{tpu_custom_call.1} parent=15 // pred_region
          %p306 = scmp.lt.s32.totalorder %s25, 1
          %s307 = scalar_select %p306, %s25, 1
          %s308 = smul.addr %s307, 4
          %s309 = smul.addr %s308, 4
          %s310 = scalar_lea.vmem %s3, %s309
        $region32: #{tpu_custom_call.1} parent=15 // pred_fallthru
          _
        // Predicated region
        $region33: #{tpu_custom_call.1} parent=15 // pred_check
          %p311 = pneg %p153
        $region34: #{tpu_custom_call.1} parent=15 // pred_check_branch
          %313 = sbr.rel (%p311) target = $region36
        $region35: #{tpu_custom_call.1} parent=15 // pred_region
          %p314 = scmp.lt.s32.totalorder %s25, 1
          %s315 = scalar_select %p314, %s25, 1
          %s316 = smul.addr %s315, 8
          %s317 = scalar_lea.vmem %s4, %s316
        $region36: #{tpu_custom_call.1} parent=15 // pred_fallthru
          _
        // Predicated region
        $region37: #{tpu_custom_call.1} parent=15 // pred_check
          %p318 = pneg %p179
        $region38: #{tpu_custom_call.1} parent=15 // pred_check_branch
          %320 = sbr.rel (%p318) target = $region40
        $region39: #{tpu_custom_call.1} parent=15 // pred_region
          %p321 = scmp.lt.s32.totalorder %s25, 1
          %s322 = scalar_select %p321, %s25, 1
          %s323 = smul.addr %s322, 4
          %s324 = smul.addr %s323, 4
          %s325 = scalar_lea.vmem %s5, %s324
        $region40: #{tpu_custom_call.1} parent=15 // pred_fallthru
          _
        // Predicated region
        $region41: #{tpu_custom_call.1} parent=15 // pred_check
          %p326 = pneg %p205
        $region42: #{tpu_custom_call.1} parent=15 // pred_check_branch
          %328 = sbr.rel (%p326) target = $region44
        $region43: #{tpu_custom_call.1} parent=15 // pred_region
          %p329 = scmp.lt.s32.totalorder %s25, 1
          %s330 = scalar_select %p329, %s25, 1
          %s331 = scalar_lea.vmem %s6, %s330
        $region44: #{tpu_custom_call.1} parent=15 // pred_fallthru
          _
        // Predicated region
        $region45: #{tpu_custom_call.1} parent=15 // pred_check
          %p332 = pneg %p231
        $region46: #{tpu_custom_call.1} parent=15 // pred_check_branch
          %334 = sbr.rel (%p332) target = $region48
        $region47: #{tpu_custom_call.1} parent=15 // pred_region
          %p335 = scmp.lt.s32.totalorder %s25, 1
          %s336 = scalar_select %p335, %s25, 1
          %s337 = smul.addr %s336, 16
          %s338 = smul.addr %s337, 4
          %s339 = scalar_lea.vmem %s7, %s338
        $region48: #{tpu_custom_call.1} parent=15 // pred_fallthru
          _
      $region16: #{tpu_custom_call.1} parent=5 // pred_fallthru
        _
      %p340 = scmp.le.s32.totalorder 1, %s17
      %p341 = scmp.lt.s32.totalorder %s17, 5
      %p342 = pnand %p340, %p341
      %p343 = pneg %p342
      // Predicated region
      $region49: #{tpu_custom_call.1} parent=5 // pred_check
        _
      $region50: #{tpu_custom_call.1} parent=5 // pred_check_branch
        %345 = sbr.rel (%p342) target = $region52
      $region51: #{tpu_custom_call.1} parent=5 // pred_region
        %s346 = ssub.s32 %s17, 1
        %p347 = scmp.lt.s32.totalorder %s26, 1
        %s348 = scalar_select %p347, %s26, 1
        %s349 = smul.addr %s348, 8
        %s350 = scalar_lea.vmem %s0, %s349
        %p351 = pneg %p55
        %p352 = pneg %p52
        %p353 = scmp.lt.s32.totalorder %s26, 1
        %s354 = scalar_select %p353, %s26, 1
        %s355 = scalar_lea.vmem %s1, %s354
        %p356 = pneg %p81
        %p357 = pneg %p78
        %p358 = scmp.lt.s32.totalorder %s27, 1
        %s359 = scalar_select %p358, %s27, 1
        %s360 = smul.addr %s359, 3
        %s361 = smul.addr %s360, 4
        %s362 = scalar_lea.vmem %s2, %s361
        %p363 = pneg %p107
        %p364 = pneg %p104
        %p365 = scmp.lt.s32.totalorder %s27, 1
        %s366 = scalar_select %p365, %s27, 1
        %s367 = smul.addr %s366, 4
        %s368 = smul.addr %s367, 4
        %s369 = scalar_lea.vmem %s3, %s368
        %p370 = pneg %p133
        %p371 = pneg %p130
        %p372 = scmp.lt.s32.totalorder %s27, 1
        %s373 = scalar_select %p372, %s27, 1
        %s374 = smul.addr %s373, 8
        %s375 = scalar_lea.vmem %s4, %s374
        %p376 = pneg %p159
        %p377 = pneg %p156
        %p378 = scmp.lt.s32.totalorder %s27, 1
        %s379 = scalar_select %p378, %s27, 1
        %s380 = smul.addr %s379, 4
        %s381 = smul.addr %s380, 4
        %s382 = scalar_lea.vmem %s5, %s381
        %p383 = pneg %p185
        %p384 = pneg %p182
        %p385 = scmp.lt.s32.totalorder %s27, 1
        %s386 = scalar_select %p385, %s27, 1
        %s387 = scalar_lea.vmem %s6, %s386
        %p388 = pneg %p211
        %p389 = pneg %p208
        %p390 = scmp.lt.s32.totalorder %s27, 1
        %s391 = scalar_select %p390, %s27, 1
        %s392 = smul.addr %s391, 16
        %s393 = smul.addr %s392, 4
        %s394 = scalar_lea.vmem %s7, %s393
        %p395 = pneg %p237
        %p396 = pneg %p234
        %p397 = pneg %p263
        %p398 = pneg %p260
        %s399 = sand.u32 %s250, 1
        %s400 = scalar_lea.sflag [#allocation4], %s399
        %s401 = sand.u32 %s250, 1
        %s402 = smul.addr %s401, 8
        %s403 = scalar_lea.vmem [#allocation3], %s402
        %p404 = scmp.lt.s32.totalorder %s26, 1
        %s405 = scalar_select %p404, %s26, 1
        %s406 = smul.addr %s405, 8
        %s407 = scalar_lea.vmem %s0, %s406
        %p408 = scmp.lt.s32.totalorder %s26, 1
        %s409 = scalar_select %p408, %s26, 1
        %s410 = scalar_lea.vmem %s1, %s409
        %p411 = scmp.lt.s32.totalorder %s27, 1
        %s412 = scalar_select %p411, %s27, 1
        %s413 = smul.addr %s412, 3
        %s414 = smul.addr %s413, 4
        %s415 = scalar_lea.vmem %s2, %s414
        %p416 = scmp.lt.s32.totalorder %s27, 1
        %s417 = scalar_select %p416, %s27, 1
        %s418 = smul.addr %s417, 4
        %s419 = smul.addr %s418, 4
        %s420 = scalar_lea.vmem %s3, %s419
        %p421 = scmp.lt.s32.totalorder %s27, 1
        %s422 = scalar_select %p421, %s27, 1
        %s423 = smul.addr %s422, 8
        %s424 = scalar_lea.vmem %s4, %s423
        %p425 = scmp.lt.s32.totalorder %s27, 1
        %s426 = scalar_select %p425, %s27, 1
        %s427 = smul.addr %s426, 4
        %s428 = smul.addr %s427, 4
        %s429 = scalar_lea.vmem %s5, %s428
        %p430 = scmp.lt.s32.totalorder %s27, 1
        %s431 = scalar_select %p430, %s27, 1
        %s432 = scalar_lea.vmem %s6, %s431
        %p433 = scmp.lt.s32.totalorder %s27, 1
        %s434 = scalar_select %p433, %s27, 1
        %s435 = smul.addr %s434, 16
        %s436 = smul.addr %s435, 4
        %s437 = scalar_lea.vmem %s7, %s436
        %p439 = scmp.eq.s32.totalorder %s27, 0
        // Predicated region
        $region53: #{tpu_custom_call.1} parent=51 // pred_check
          %p440 = pneg %p439
        $region54: #{tpu_custom_call.1} parent=51 // pred_check_branch
          %442 = sbr.rel (%p440) target = $region56
        $region55: #{tpu_custom_call.1} parent=51 // pred_region
          %v443 = vld [vmem:[%s407] sm:$0xff]
          %vm444 = vcmask 261120
          %445 = vst.msk [vmem:[#allocation2] sm:$0xff] %vm444, %v443
        $region56: #{tpu_custom_call.1} parent=51 // pred_fallthru
          _
        %v446 = vld [vmem:[#allocation2] sm:$0xff]
        %v447 = vpack.c.bf16 %v446, %v446
        %v448 = vld [vmem:[%s410] sm:$0x1]
        %v449 = vld [vmem:[%s415] sm:$0xf]
        %s450 = scalar_lea.vmem %s415, 4
        %v451 = vld [vmem:[%s450] sm:$0xf]
        %s452 = scalar_lea.vmem %s415, 8
        %v453 = vld [vmem:[%s452] sm:$0xf]
        %vm454 = vcmask 64512
        %v456 = vsel %vm454, %v447, 0
        %vm458 = vcmask 1043456
        %v460 = vsel %vm458, %v449, 0
        %462 = vmatpush.bf16.msra.mxu0 0
        %463 = vmatpush.bf16.msra.mxu0 0
        %464 = vmatpush.bf16.msra.mxu0 0
        %465 = vmatpush.bf16.msra.mxu0 0
        %466 = vmatpush.bf16.msra.mxu0 0
        %467 = vmatpush.bf16.msra.mxu0 0
        %468 = vmatpush.bf16.msra.mxu0 0
        %469 = vmatpush.bf16.msra.mxu0 %v460
        %470 = vmatmul.bf16.gmra.mxu0 %v456
        %v471 = vpop.f32.mrf.mxu0
        %v472 = vadd.f32 0.0, %v471
        %v473 = vpop.f32.mrf.mxu0
        %474 = vdwg.mxu0
        %v475 = vpack.c.bf16 %v472, %v472
        %v477 = vsel %vm458, %v451, 0
        %479 = vmatpush.bf16.msra.mxu0 0
        %480 = vmatpush.bf16.msra.mxu0 0
        %481 = vmatpush.bf16.msra.mxu0 0
        %482 = vmatpush.bf16.msra.mxu0 0
        %483 = vmatpush.bf16.msra.mxu0 0
        %484 = vmatpush.bf16.msra.mxu0 0
        %485 = vmatpush.bf16.msra.mxu0 0
        %486 = vmatpush.bf16.msra.mxu0 %v477
        %487 = vmatmul.bf16.gmra.mxu0 %v456
        %v488 = vpop.f32.mrf.mxu0
        %v489 = vadd.f32 0.0, %v488
        %v490 = vpop.f32.mrf.mxu0
        %491 = vdwg.mxu0
        %v492 = vpack.c.bf16 %v489, %v489
        %v494 = vsel %vm458, %v453, 0
        %496 = vmatpush.bf16.msra.mxu0 0
        %497 = vmatpush.bf16.msra.mxu0 0
        %498 = vmatpush.bf16.msra.mxu0 0
        %499 = vmatpush.bf16.msra.mxu0 0
        %500 = vmatpush.bf16.msra.mxu0 0
        %501 = vmatpush.bf16.msra.mxu0 0
        %502 = vmatpush.bf16.msra.mxu0 0
        %503 = vmatpush.bf16.msra.mxu0 %v494
        %504 = vmatmul.bf16.gmra.mxu0 %v456
        %v505 = vpop.f32.mrf.mxu0
        %v506 = vadd.f32 0.0, %v505
        %v507 = vpop.f32.mrf.mxu0
        %508 = vdwg.mxu0
        %v509 = vpack.c.bf16 %v506, %v506
        %v511 = vperm.slane %v448, 0
        %v514 = vsel %vm454, %v475, 0
        %v517 = vsel %vm454, %v492, 0
        %519 = vmatpush.bf16.xpose.msra.mxu0 0
        %520 = vmatpush.bf16.xpose.msra.mxu0 0
        %521 = vmatpush.bf16.xpose.msra.mxu0 0
        %522 = vmatpush.bf16.xpose.msra.mxu0 0
        %523 = vmatpush.bf16.xpose.msra.mxu0 0
        %524 = vmatpush.bf16.xpose.msra.mxu0 0
        %525 = vmatpush.bf16.xpose.msra.mxu0 0
        %526 = vmatpush.bf16.xpose.msra.mxu0 %v517
        %527 = vmatmul.bf16.gmra.mxu0 %v514
        %v528 = vpop.f32.mrf.mxu0
        %v529 = vadd.f32 %v511, %v528
        %v530 = vpop.f32.mrf.mxu0
        %531 = vdwg.mxu0
        %v532 = vsel %vm454, %v529, -inf
        %533 = vmax.xlane.f32.xlu0 %v532
        %v534 = vpop.xlane.xlu0 %533
        %v535 = vsub.f32 %v529, %v534
        %v536 = vmul.f32 %v535, 1.442695
        %v537 = vpow.pop %v536
        %v538 = vsel %vm454, %v537, 0.0
        %539 = vadd.xlane.f32.xlu0 %v538
        %v540 = vpop.xlane.xlu0 %539
        %v541 = vrcp.pop %v540
        %v542 = vmul.f32 %v537, %v541
        %v543 = vpack.c.bf16 %v542, %v542
        %v545 = vsel %vm454, %v543, 0
        %v548 = vsel %vm458, %v509, 0
        %550 = vmatpush.bf16.msra.mxu0 0
        %551 = vmatpush.bf16.msra.mxu0 0
        %552 = vmatpush.bf16.msra.mxu0 0
        %553 = vmatpush.bf16.msra.mxu0 0
        %554 = vmatpush.bf16.msra.mxu0 0
        %555 = vmatpush.bf16.msra.mxu0 0
        %556 = vmatpush.bf16.msra.mxu0 0
        %557 = vmatpush.bf16.msra.mxu0 %v548
        %558 = vmatmul.bf16.gmra.mxu0 %v545
        %v559 = vpop.f32.mrf.mxu0
        %v560 = vadd.f32 0.0, %v559
        %v561 = vpop.f32.mrf.mxu0
        %562 = vdwg.mxu0
        %v563 = vpack.c.bf16 %v560, %v560
        %v564 = vld [vmem:[%s420] sm:$0xf]
        %v566 = vunpack.c.l.b16 %v447
        %v567 = vpack.c.b16 %v566, %v566
        %568 = vrot.lane.b32.xlu0 %v567, 120
        %v569 = vpop.permute.xlu0 %568
        %v571 = vsel %vm454, %v569, 0
        %573 = vmatpush.bf16.msra.mxu0 0
        %574 = vmatpush.bf16.msra.mxu0 0
        %575 = vmatpush.bf16.msra.mxu0 0
        %576 = vmatpush.bf16.msra.mxu0 0
        %577 = vmatpush.bf16.msra.mxu0 0
        %578 = vmatpush.bf16.msra.mxu0 0
        %579 = vmatpush.bf16.msra.mxu0 0
        %580 = vmatpush.bf16.msra.mxu0 %v460
        %581 = vmatmul.bf16.gmra.mxu0 %v571
        %v582 = vpop.f32.mrf.mxu0
        %v583 = vadd.f32 0.0, %v582
        %v584 = vpop.f32.mrf.mxu0
        %585 = vdwg.mxu0
        %v586 = vpack.c.bf16 %v583, %v583
        %587 = vmatpush.bf16.msra.mxu0 0
        %588 = vmatpush.bf16.msra.mxu0 0
        %589 = vmatpush.bf16.msra.mxu0 0
        %590 = vmatpush.bf16.msra.mxu0 0
        %591 = vmatpush.bf16.msra.mxu0 0
        %592 = vmatpush.bf16.msra.mxu0 0
        %593 = vmatpush.bf16.msra.mxu0 0
        %594 = vmatpush.bf16.msra.mxu0 %v477
        %595 = vmatmul.bf16.gmra.mxu0 %v571
        %v596 = vpop.f32.mrf.mxu0
        %v597 = vadd.f32 0.0, %v596
        %v598 = vpop.f32.mrf.mxu0
        %599 = vdwg.mxu0
        %v600 = vpack.c.bf16 %v597, %v597
        %601 = vmatpush.bf16.msra.mxu0 0
        %602 = vmatpush.bf16.msra.mxu0 0
        %603 = vmatpush.bf16.msra.mxu0 0
        %604 = vmatpush.bf16.msra.mxu0 0
        %605 = vmatpush.bf16.msra.mxu0 0
        %606 = vmatpush.bf16.msra.mxu0 0
        %607 = vmatpush.bf16.msra.mxu0 0
        %608 = vmatpush.bf16.msra.mxu0 %v494
        %609 = vmatmul.bf16.gmra.mxu0 %v571
        %v610 = vpop.f32.mrf.mxu0
        %v611 = vadd.f32 0.0, %v610
        %v612 = vpop.f32.mrf.mxu0
        %613 = vdwg.mxu0
        %v614 = vpack.c.bf16 %v611, %v611
        %v616 = vsel %vm454, %v586, 0
        %v619 = vsel %vm454, %v600, 0
        %621 = vmatpush.bf16.xpose.msra.mxu0 0
        %622 = vmatpush.bf16.xpose.msra.mxu0 0
        %623 = vmatpush.bf16.xpose.msra.mxu0 0
        %624 = vmatpush.bf16.xpose.msra.mxu0 0
        %625 = vmatpush.bf16.xpose.msra.mxu0 0
        %626 = vmatpush.bf16.xpose.msra.mxu0 0
        %627 = vmatpush.bf16.xpose.msra.mxu0 0
        %628 = vmatpush.bf16.xpose.msra.mxu0 %v619
        %629 = vmatmul.bf16.gmra.mxu0 %v616
        %v630 = vpop.f32.mrf.mxu0
        %v631 = vadd.f32 %v511, %v630
        %v632 = vpop.f32.mrf.mxu0
        %633 = vdwg.mxu0
        %v634 = vsel %vm454, %v631, -inf
        %635 = vmax.xlane.f32.xlu0 %v634
        %v636 = vpop.xlane.xlu0 %635
        %v637 = vsub.f32 %v631, %v636
        %v638 = vmul.f32 %v637, 1.442695
        %v639 = vpow.pop %v638
        %v640 = vsel %vm454, %v639, 0.0
        %641 = vadd.xlane.f32.xlu0 %v640
        %v642 = vpop.xlane.xlu0 %641
        %v643 = vrcp.pop %v642
        %v644 = vmul.f32 %v639, %v643
        %v645 = vpack.c.bf16 %v644, %v644
        %v647 = vsel %vm454, %v645, 0
        %v650 = vsel %vm458, %v614, 0
        %652 = vmatpush.bf16.msra.mxu0 0
        %653 = vmatpush.bf16.msra.mxu0 0
        %654 = vmatpush.bf16.msra.mxu0 0
        %655 = vmatpush.bf16.msra.mxu0 0
        %656 = vmatpush.bf16.msra.mxu0 0
        %657 = vmatpush.bf16.msra.mxu0 0
        %658 = vmatpush.bf16.msra.mxu0 0
        %659 = vmatpush.bf16.msra.mxu0 %v650
        %660 = vmatmul.bf16.gmra.mxu0 %v647
        %v661 = vpop.f32.mrf.mxu0
        %v662 = vadd.f32 0.0, %v661
        %v663 = vpop.f32.mrf.mxu0
        %664 = vdwg.mxu0
        %v665 = vpack.c.bf16 %v662, %v662
        %s666 = scalar_lea.vmem %s420, 4
        %v667 = vld [vmem:[%s666] sm:$0xf]
        %v669 = vsel %vm454, %v665, 0
        %v672 = vsel %vm458, %v667, 0
        %674 = vmatpush.bf16.msra.mxu0 0
        %675 = vmatpush.bf16.msra.mxu0 0
        %676 = vmatpush.bf16.msra.mxu0 0
        %677 = vmatpush.bf16.msra.mxu0 0
        %678 = vmatpush.bf16.msra.mxu0 0
        %679 = vmatpush.bf16.msra.mxu0 0
        %680 = vmatpush.bf16.msra.mxu0 0
        %681 = vmatpush.bf16.msra.mxu0 %v672
        %682 = vmatmul.bf16.gmra.mxu0 %v669
        %v683 = vpop.f32.mrf.mxu0
        %v684 = vadd.f32 0.0, %v683
        %v685 = vpop.f32.mrf.mxu0
        %686 = vdwg.mxu0
        %v688 = vsel %vm454, %v563, 0
        %v691 = vsel %vm458, %v564, 0
        %693 = vmatpush.bf16.msra.mxu0 0
        %694 = vmatpush.bf16.msra.mxu0 0
        %695 = vmatpush.bf16.msra.mxu0 0
        %696 = vmatpush.bf16.msra.mxu0 0
        %697 = vmatpush.bf16.msra.mxu0 0
        %698 = vmatpush.bf16.msra.mxu0 0
        %699 = vmatpush.bf16.msra.mxu0 0
        %700 = vmatpush.bf16.msra.mxu0 %v691
        %701 = vmatmul.bf16.gmra.mxu0 %v688
        %v702 = vpop.f32.mrf.mxu0
        %v703 = vadd.f32 %v684, %v702
        %v704 = vpop.f32.mrf.mxu0
        %705 = vdwg.mxu0
        %706 = vrot.lane.b32.xlu0 %v567, 112
        %v707 = vpop.permute.xlu0 %706
        %v709 = vsel %vm454, %v707, 0
        %711 = vmatpush.bf16.msra.mxu0 0
        %712 = vmatpush.bf16.msra.mxu0 0
        %713 = vmatpush.bf16.msra.mxu0 0
        %714 = vmatpush.bf16.msra.mxu0 0
        %715 = vmatpush.bf16.msra.mxu0 0
        %716 = vmatpush.bf16.msra.mxu0 0
        %717 = vmatpush.bf16.msra.mxu0 0
        %718 = vmatpush.bf16.msra.mxu0 %v460
        %719 = vmatmul.bf16.gmra.mxu0 %v709
        %v720 = vpop.f32.mrf.mxu0
        %v721 = vadd.f32 0.0, %v720
        %v722 = vpop.f32.mrf.mxu0
        %723 = vdwg.mxu0
        %v724 = vpack.c.bf16 %v721, %v721
        %725 = vmatpush.bf16.msra.mxu0 0
        %726 = vmatpush.bf16.msra.mxu0 0
        %727 = vmatpush.bf16.msra.mxu0 0
        %728 = vmatpush.bf16.msra.mxu0 0
        %729 = vmatpush.bf16.msra.mxu0 0
        %730 = vmatpush.bf16.msra.mxu0 0
        %731 = vmatpush.bf16.msra.mxu0 0
        %732 = vmatpush.bf16.msra.mxu0 %v477
        %733 = vmatmul.bf16.gmra.mxu0 %v709
        %v734 = vpop.f32.mrf.mxu0
        %v735 = vadd.f32 0.0, %v734
        %v736 = vpop.f32.mrf.mxu0
        %737 = vdwg.mxu0
        %v738 = vpack.c.bf16 %v735, %v735
        %739 = vmatpush.bf16.msra.mxu0 0
        %740 = vmatpush.bf16.msra.mxu0 0
        %741 = vmatpush.bf16.msra.mxu0 0
        %742 = vmatpush.bf16.msra.mxu0 0
        %743 = vmatpush.bf16.msra.mxu0 0
        %744 = vmatpush.bf16.msra.mxu0 0
        %745 = vmatpush.bf16.msra.mxu0 0
        %746 = vmatpush.bf16.msra.mxu0 %v494
        %747 = vmatmul.bf16.gmra.mxu0 %v709
        %v748 = vpop.f32.mrf.mxu0
        %v749 = vadd.f32 0.0, %v748
        %v750 = vpop.f32.mrf.mxu0
        %751 = vdwg.mxu0
        %v752 = vpack.c.bf16 %v749, %v749
        %v754 = vsel %vm454, %v724, 0
        %v757 = vsel %vm454, %v738, 0
        %759 = vmatpush.bf16.xpose.msra.mxu0 0
        %760 = vmatpush.bf16.xpose.msra.mxu0 0
        %761 = vmatpush.bf16.xpose.msra.mxu0 0
        %762 = vmatpush.bf16.xpose.msra.mxu0 0
        %763 = vmatpush.bf16.xpose.msra.mxu0 0
        %764 = vmatpush.bf16.xpose.msra.mxu0 0
        %765 = vmatpush.bf16.xpose.msra.mxu0 0
        %766 = vmatpush.bf16.xpose.msra.mxu0 %v757
        %767 = vmatmul.bf16.gmra.mxu0 %v754
        %v768 = vpop.f32.mrf.mxu0
        %v769 = vadd.f32 %v511, %v768
        %v770 = vpop.f32.mrf.mxu0
        %771 = vdwg.mxu0
        %v772 = vsel %vm454, %v769, -inf
        %773 = vmax.xlane.f32.xlu0 %v772
        %v774 = vpop.xlane.xlu0 %773
        %v775 = vsub.f32 %v769, %v774
        %v776 = vmul.f32 %v775, 1.442695
        %v777 = vpow.pop %v776
        %v778 = vsel %vm454, %v777, 0.0
        %779 = vadd.xlane.f32.xlu0 %v778
        %v780 = vpop.xlane.xlu0 %779
        %v781 = vrcp.pop %v780
        %v782 = vmul.f32 %v777, %v781
        %v783 = vpack.c.bf16 %v782, %v782
        %v785 = vsel %vm454, %v783, 0
        %v788 = vsel %vm458, %v752, 0
        %790 = vmatpush.bf16.msra.mxu0 0
        %791 = vmatpush.bf16.msra.mxu0 0
        %792 = vmatpush.bf16.msra.mxu0 0
        %793 = vmatpush.bf16.msra.mxu0 0
        %794 = vmatpush.bf16.msra.mxu0 0
        %795 = vmatpush.bf16.msra.mxu0 0
        %796 = vmatpush.bf16.msra.mxu0 0
        %797 = vmatpush.bf16.msra.mxu0 %v788
        %798 = vmatmul.bf16.gmra.mxu0 %v785
        %v799 = vpop.f32.mrf.mxu0
        %v800 = vadd.f32 0.0, %v799
        %v801 = vpop.f32.mrf.mxu0
        %802 = vdwg.mxu0
        %v803 = vpack.c.bf16 %v800, %v800
        %s804 = scalar_lea.vmem %s420, 8
        %v805 = vld [vmem:[%s804] sm:$0xf]
        %v807 = vsel %vm454, %v803, 0
        %v810 = vsel %vm458, %v805, 0
        %812 = vmatpush.bf16.msra.mxu0 0
        %813 = vmatpush.bf16.msra.mxu0 0
        %814 = vmatpush.bf16.msra.mxu0 0
        %815 = vmatpush.bf16.msra.mxu0 0
        %816 = vmatpush.bf16.msra.mxu0 0
        %817 = vmatpush.bf16.msra.mxu0 0
        %818 = vmatpush.bf16.msra.mxu0 0
        %819 = vmatpush.bf16.msra.mxu0 %v810
        %820 = vmatmul.bf16.gmra.mxu0 %v807
        %v821 = vpop.f32.mrf.mxu0
        %v822 = vadd.f32 0.0, %v821
        %v823 = vpop.f32.mrf.mxu0
        %824 = vdwg.mxu0
        %v825 = vadd.f32 %v703, %v822
        %826 = vrot.lane.b32.xlu0 %v567, 104
        %v827 = vpop.permute.xlu0 %826
        %v829 = vsel %vm454, %v827, 0
        %831 = vmatpush.bf16.msra.mxu0 0
        %832 = vmatpush.bf16.msra.mxu0 0
        %833 = vmatpush.bf16.msra.mxu0 0
        %834 = vmatpush.bf16.msra.mxu0 0
        %835 = vmatpush.bf16.msra.mxu0 0
        %836 = vmatpush.bf16.msra.mxu0 0
        %837 = vmatpush.bf16.msra.mxu0 0
        %838 = vmatpush.bf16.msra.mxu0 %v460
        %839 = vmatmul.bf16.gmra.mxu0 %v829
        %v840 = vpop.f32.mrf.mxu0
        %v841 = vadd.f32 0.0, %v840
        %v842 = vpop.f32.mrf.mxu0
        %843 = vdwg.mxu0
        %v844 = vpack.c.bf16 %v841, %v841
        %845 = vmatpush.bf16.msra.mxu0 0
        %846 = vmatpush.bf16.msra.mxu0 0
        %847 = vmatpush.bf16.msra.mxu0 0
        %848 = vmatpush.bf16.msra.mxu0 0
        %849 = vmatpush.bf16.msra.mxu0 0
        %850 = vmatpush.bf16.msra.mxu0 0
        %851 = vmatpush.bf16.msra.mxu0 0
        %852 = vmatpush.bf16.msra.mxu0 %v477
        %853 = vmatmul.bf16.gmra.mxu0 %v829
        %v854 = vpop.f32.mrf.mxu0
        %v855 = vadd.f32 0.0, %v854
        %v856 = vpop.f32.mrf.mxu0
        %857 = vdwg.mxu0
        %v858 = vpack.c.bf16 %v855, %v855
        %859 = vmatpush.bf16.msra.mxu0 0
        %860 = vmatpush.bf16.msra.mxu0 0
        %861 = vmatpush.bf16.msra.mxu0 0
        %862 = vmatpush.bf16.msra.mxu0 0
        %863 = vmatpush.bf16.msra.mxu0 0
        %864 = vmatpush.bf16.msra.mxu0 0
        %865 = vmatpush.bf16.msra.mxu0 0
        %866 = vmatpush.bf16.msra.mxu0 %v494
        %867 = vmatmul.bf16.gmra.mxu0 %v829
        %v868 = vpop.f32.mrf.mxu0
        %v869 = vadd.f32 0.0, %v868
        %v870 = vpop.f32.mrf.mxu0
        %871 = vdwg.mxu0
        %v872 = vpack.c.bf16 %v869, %v869
        %v874 = vsel %vm454, %v844, 0
        %v877 = vsel %vm454, %v858, 0
        %879 = vmatpush.bf16.xpose.msra.mxu0 0
        %880 = vmatpush.bf16.xpose.msra.mxu0 0
        %881 = vmatpush.bf16.xpose.msra.mxu0 0
        %882 = vmatpush.bf16.xpose.msra.mxu0 0
        %883 = vmatpush.bf16.xpose.msra.mxu0 0
        %884 = vmatpush.bf16.xpose.msra.mxu0 0
        %885 = vmatpush.bf16.xpose.msra.mxu0 0
        %886 = vmatpush.bf16.xpose.msra.mxu0 %v877
        %887 = vmatmul.bf16.gmra.mxu0 %v874
        %v888 = vpop.f32.mrf.mxu0
        %v889 = vadd.f32 %v511, %v888
        %v890 = vpop.f32.mrf.mxu0
        %891 = vdwg.mxu0
        %v892 = vsel %vm454, %v889, -inf
        %893 = vmax.xlane.f32.xlu0 %v892
        %v894 = vpop.xlane.xlu0 %893
        %v895 = vsub.f32 %v889, %v894
        %v896 = vmul.f32 %v895, 1.442695
        %v897 = vpow.pop %v896
        %v898 = vsel %vm454, %v897, 0.0
        %899 = vadd.xlane.f32.xlu0 %v898
        %v900 = vpop.xlane.xlu0 %899
        %v901 = vrcp.pop %v900
        %v902 = vmul.f32 %v897, %v901
        %v903 = vpack.c.bf16 %v902, %v902
        %v905 = vsel %vm454, %v903, 0
        %v908 = vsel %vm458, %v872, 0
        %910 = vmatpush.bf16.msra.mxu0 0
        %911 = vmatpush.bf16.msra.mxu0 0
        %912 = vmatpush.bf16.msra.mxu0 0
        %913 = vmatpush.bf16.msra.mxu0 0
        %914 = vmatpush.bf16.msra.mxu0 0
        %915 = vmatpush.bf16.msra.mxu0 0
        %916 = vmatpush.bf16.msra.mxu0 0
        %917 = vmatpush.bf16.msra.mxu0 %v908
        %918 = vmatmul.bf16.gmra.mxu0 %v905
        %v919 = vpop.f32.mrf.mxu0
        %v920 = vadd.f32 0.0, %v919
        %v921 = vpop.f32.mrf.mxu0
        %922 = vdwg.mxu0
        %v923 = vpack.c.bf16 %v920, %v920
        %s924 = scalar_lea.vmem %s420, 12
        %v925 = vld [vmem:[%s924] sm:$0xf]
        %v927 = vsel %vm454, %v923, 0
        %v930 = vsel %vm458, %v925, 0
        %932 = vmatpush.bf16.msra.mxu0 0
        %933 = vmatpush.bf16.msra.mxu0 0
        %934 = vmatpush.bf16.msra.mxu0 0
        %935 = vmatpush.bf16.msra.mxu0 0
        %936 = vmatpush.bf16.msra.mxu0 0
        %937 = vmatpush.bf16.msra.mxu0 0
        %938 = vmatpush.bf16.msra.mxu0 0
        %939 = vmatpush.bf16.msra.mxu0 %v930
        %940 = vmatmul.bf16.gmra.mxu0 %v927
        %v941 = vpop.f32.mrf.mxu0
        %v942 = vadd.f32 0.0, %v941
        %v943 = vpop.f32.mrf.mxu0
        %944 = vdwg.mxu0
        %v945 = vadd.f32 %v825, %v942
        %v946 = vld [vmem:[%s424] sm:$0xff]
        %v947 = vperm.slane %v946, 0
        %v948 = vadd.f32 %v945, %v947
        %v949 = vadd.f32 %v948, %v446
        %vm950 = vcmask 261120
        %v951 = vsel %vm950, %v949, 0.0
        %952 = vadd.xlane.f32.xlu0 %v951
        %v953 = vpop.xlane.xlu0 %952
        %v954 = vrcp.pop 32.0
        %v955 = vmul.f32 32.0, %v954
        %v956 = vsub.f32 1.0, %v955
        %v957 = vmul.f32 %v954, %v956
        %v958 = vadd.f32 %v954, %v957
        %vm959 = vweird.f32 %v954
        %v960 = vsel %vm959, %v954, %v958
        %v961 = vmul.f32 %v953, %v960
        %v962 = vsub.f32 %v949, %v961
        %v963 = vmul.f32 %v962, %v962
        %v964 = vsel %vm950, %v963, 0.0
        %965 = vadd.xlane.f32.xlu0 %v964
        %v966 = vpop.xlane.xlu0 %965
        %v967 = vmul.f32 %v966, %v960
        %v968 = vadd.f32 %v967, 1e-05
        %v969 = vrsqrt.pop %v968
        %v970 = vmul.f32 %v969, %v968
        %v971 = vmul.f32 %v970, %v969
        %v972 = vmul.f32 0.5, %v971
        %v973 = vsub.f32 1.5, %v972
        %v974 = vmul.f32 %v969, %v973
        %vm975 = vweird.f32 %v968
        %vm976 = vweird.f32 %v969
        %vm977 = vmor %vm975, %vm976
        %v978 = vsel %vm977, %v969, %v974
        %v979 = vmul.f32 %v962, %v978
        %v980 = vperm.slane %v946, 1
        %v981 = vmul.f32 %v979, %v980
        %v982 = vperm.slane %v946, 2
        %v983 = vadd.f32 %v981, %v982
        %v984 = vpack.c.bf16 %v983, %v983
        %v985 = vld [vmem:[%s429] sm:$0xf]
        %v986 = vld [vmem:[%s429 + $0x4] sm:$0xf]
        %v987 = vld [vmem:[%s429 + $0x8] sm:$0xf]
        %v988 = vld [vmem:[%s429 + $0xc] sm:$0xf]
        %v989 = vld [vmem:[%s432] sm:$0x1]
        %v991 = vperm.slane %v989, 0
        %v997 = vunpack.c.l.b16 %v985
        %v998 = vunpack.c.l.b16 %v986
        %v999 = vunpack.c.l.b16 %v987
        %v1000 = vunpack.c.l.b16 %v988
        %v1001 = vpack.c.b16 %v998, %v997
        %v1002 = vpack.c.b16 %v1000, %v999
        %v1006 = vsel %vm950, %v984, 0
        %1008 = vmatpush.bf16.msra.mxu0 0
        %1009 = vmatpush.bf16.msra.mxu0 0
        %1010 = vmatpush.bf16.msra.mxu0 0
        %1011 = vmatpush.bf16.msra.mxu0 0
        %1012 = vmatpush.bf16.msra.mxu0 0
        %1013 = vmatpush.bf16.msra.mxu0 0
        %1014 = vmatpush.bf16.msra.mxu0 %v1002
        %1015 = vmatpush.bf16.msra.mxu0 %v1001
        %1016 = vmatmul.bf16.gmra.mxu0 %v1006
        %v1017 = vpop.f32.mrf.mxu0
        %v1018 = vadd.f32 %v991, %v1017
        %v1019 = vpop.f32.mrf.mxu0
        %1020 = vdwg.mxu0
        %v1021 = vmax.f32 %v1018, 0.0
        %v1022 = vpack.c.bf16 %v1021, %v1021
        %v1023 = vld [vmem:[%s437] sm:$0xf]
        %v1024 = vld [vmem:[%s437 + $0x4] sm:$0xf]
        %v1025 = vld [vmem:[%s437 + $0x8] sm:$0xf]
        %v1026 = vld [vmem:[%s437 + $0xc] sm:$0xf]
        %v1027 = vld [vmem:[%s437 + $0x10] sm:$0xf]
        %v1028 = vld [vmem:[%s437 + $0x14] sm:$0xf]
        %v1029 = vld [vmem:[%s437 + $0x18] sm:$0xf]
        %v1030 = vld [vmem:[%s437 + $0x1c] sm:$0xf]
        %v1031 = vld [vmem:[%s437 + $0x20] sm:$0xf]
        %v1032 = vld [vmem:[%s437 + $0x24] sm:$0xf]
        %v1033 = vld [vmem:[%s437 + $0x28] sm:$0xf]
        %v1034 = vld [vmem:[%s437 + $0x2c] sm:$0xf]
        %v1035 = vld [vmem:[%s437 + $0x30] sm:$0xf]
        %v1036 = vld [vmem:[%s437 + $0x34] sm:$0xf]
        %v1037 = vld [vmem:[%s437 + $0x38] sm:$0xf]
        %v1038 = vld [vmem:[%s437 + $0x3c] sm:$0xf]
        %v1039 = vperm.slane %v946, 3
        %v1056 = vunpack.c.l.b16 %v1023
        %v1057 = vunpack.c.l.b16 %v1024
        %v1058 = vunpack.c.l.b16 %v1025
        %v1059 = vunpack.c.l.b16 %v1026
        %v1060 = vunpack.c.l.b16 %v1027
        %v1061 = vunpack.c.l.b16 %v1028
        %v1062 = vunpack.c.l.b16 %v1029
        %v1063 = vunpack.c.l.b16 %v1030
        %v1064 = vunpack.c.l.b16 %v1031
        %v1065 = vunpack.c.l.b16 %v1032
        %v1066 = vunpack.c.l.b16 %v1033
        %v1067 = vunpack.c.l.b16 %v1034
        %v1068 = vunpack.c.l.b16 %v1035
        %v1069 = vunpack.c.l.b16 %v1036
        %v1070 = vunpack.c.l.b16 %v1037
        %v1071 = vunpack.c.l.b16 %v1038
        %v1072 = vpack.c.b16 %v1057, %v1056
        %v1073 = vpack.c.b16 %v1059, %v1058
        %v1074 = vpack.c.b16 %v1061, %v1060
        %v1075 = vpack.c.b16 %v1063, %v1062
        %v1076 = vpack.c.b16 %v1065, %v1064
        %v1077 = vpack.c.b16 %v1067, %v1066
        %v1078 = vpack.c.b16 %v1069, %v1068
        %v1079 = vpack.c.b16 %v1071, %v1070
        %1088 = vmatpush.bf16.msra.mxu0 %v1079
        %1089 = vmatpush.bf16.msra.mxu0 %v1078
        %1090 = vmatpush.bf16.msra.mxu0 %v1077
        %1091 = vmatpush.bf16.msra.mxu0 %v1076
        %1092 = vmatpush.bf16.msra.mxu0 %v1075
        %1093 = vmatpush.bf16.msra.mxu0 %v1074
        %1094 = vmatpush.bf16.msra.mxu0 %v1073
        %1095 = vmatpush.bf16.msra.mxu0 %v1072
        %1096 = vmatmul.bf16.gmra.mxu0 %v1022
        %v1097 = vpop.f32.mrf.mxu0
        %v1098 = vadd.f32 %v1039, %v1097
        %v1099 = vpop.f32.mrf.mxu0
        %1100 = vdwg.mxu0
        %v1101 = vadd.f32 %v1098, %v983
        %v1102 = vsel %vm950, %v1101, 0.0
        %1103 = vadd.xlane.f32.xlu0 %v1102
        %v1104 = vpop.xlane.xlu0 %1103
        %v1105 = vmul.f32 %v1104, %v960
        %v1106 = vsub.f32 %v1101, %v1105
        %v1107 = vmul.f32 %v1106, %v1106
        %v1108 = vsel %vm950, %v1107, 0.0
        %1109 = vadd.xlane.f32.xlu0 %v1108
        %v1110 = vpop.xlane.xlu0 %1109
        %v1111 = vmul.f32 %v1110, %v960
        %v1112 = vadd.f32 %v1111, 1e-05
        %v1113 = vrsqrt.pop %v1112
        %v1114 = vmul.f32 %v1113, %v1112
        %v1115 = vmul.f32 %v1114, %v1113
        %v1116 = vmul.f32 0.5, %v1115
        %v1117 = vsub.f32 1.5, %v1116
        %v1118 = vmul.f32 %v1113, %v1117
        %vm1119 = vweird.f32 %v1112
        %vm1120 = vweird.f32 %v1113
        %vm1121 = vmor %vm1119, %vm1120
        %v1122 = vsel %vm1121, %v1113, %v1118
        %v1123 = vmul.f32 %v1106, %v1122
        %v1124 = vperm.slane %v946, 4
        %v1125 = vmul.f32 %v1123, %v1124
        %v1126 = vperm.slane %v946, 5
        %v1127 = vadd.f32 %v1125, %v1126
        %1128 = vst.msk [vmem:[#allocation2] sm:$0xff] %vm950, %v1127
        %p1129 = scmp.eq.s32.totalorder %s27, 1
        // Predicated region
        $region57: #{tpu_custom_call.1} parent=51 // pred_check
          %p1130 = pneg %p1129
        $region58: #{tpu_custom_call.1} parent=51 // pred_check_branch
          %1132 = sbr.rel (%p1130) target = $region60
        $region59: #{tpu_custom_call.1} parent=51 // pred_region
          %1133 = vst.msk [vmem:[%s403] sm:$0xff] %vm950, %v1127
        $region60: #{tpu_custom_call.1} parent=51 // pred_fallthru
          _
        %s1134 = sand.u32 %s250, 1
        %s1135 = scalar_lea.sflag [#allocation4], %s1134
        %s1136 = sand.u32 %s250, 1
        %s1137 = smul.addr %s1136, 8
        %s1138 = scalar_lea.vmem [#allocation3], %s1137
        // Predicated region
        $region61: #{tpu_custom_call.1} parent=51 // pred_check
          %p1139 = pneg %p260
        $region62: #{tpu_custom_call.1} parent=51 // pred_check_branch
          %1141 = sbr.rel (%p1139) target = $region64
        $region63: #{tpu_custom_call.1} parent=51 // pred_region
          %1143 = vsyncadd %s1135, 0
          %s1144 = smul.addr %s26, 8
          %s1145 = scalar_lea.hbm %s8, %s1144
          %s1147 = sshll.u32 %s1138, 4
          %s1148 = int_to_ptr.vmem [resolvable:$true] %s1147
          %s1149 = sshll.u32 %s1145, 4
          %s1150 = int_to_ptr.hbm [resolvable:$true] %s1149
          %1152 = dma.vmem_to_hbm [thread:$0]  %s1148, 128, %s1150, %s1135
        $region64: #{tpu_custom_call.1} parent=51 // pred_fallthru
          _
      $region52: #{tpu_custom_call.1} parent=5 // pred_fallthru
        _
      %p1153 = scmp.le.s32.totalorder 2, %s17
      // Predicated region
      $region65: #{tpu_custom_call.1} parent=5 // pred_check
        %p1154 = pneg %p1153
      $region66: #{tpu_custom_call.1} parent=5 // pred_check_branch
        %1156 = sbr.rel (%p1154) target = $region68
      $region67: #{tpu_custom_call.1} parent=5 // pred_region
        %s1157 = ssub.s32 %s17, 2
        // Predicated region
        $region69: #{tpu_custom_call.1} parent=67 // pred_check
          %p1158 = pneg %p266
        $region70: #{tpu_custom_call.1} parent=67 // pred_check_branch
          %1160 = sbr.rel (%p1158) target = $region72
        $region71: #{tpu_custom_call.1} parent=67 // pred_region
          %s1161 = sand.u32 %s251, 1
          %s1162 = scalar_lea.sflag [#allocation4], %s1161
          %s1163 = sand.u32 %s251, 1
          %s1164 = smul.addr %s1163, 8
          %s1165 = scalar_lea.vmem [#allocation3], %s1164
          %1167 = dma.done %s1162, 128
        $region72: #{tpu_custom_call.1} parent=67 // pred_fallthru
          _
      $region68: #{tpu_custom_call.1} parent=5 // pred_fallthru
        _
    $region6: #{tpu_custom_call.1} parent=1 // loop_footer
      %s21 = sadd.s32 1, %s17
    $region7: #{tpu_custom_call.1} parent=1 // loop_footer_branch
      %16 = sbr.rel target = $region3
    $region8: #{tpu_custom_call.1} parent=1 // loop_exit
      _
    %1168 = vsyncpa [#allocation4], 1
    %s1169 = scalar_lea.sflag [#allocation4], 1
    %1170 = vsyncpa %s1169, 1

</llo_original>
